<compile_context>
chip_gen: v6e
topology: v6e:2x2x1
jax: 0.10.0
libtpu: 0.0.40
codegen_flags: <defaults>
</compile_context>

<pallas_src>
import math

import jax
import jax.numpy as jnp
from jax import lax
from jax.experimental import pallas as pl
from jax.experimental.pallas import tpu as pltpu


# ---------------------------------------------------------------------------
# Model hyper-parameters (small, synthetic)
# ---------------------------------------------------------------------------
BATCH = 2
SEQ = 16
IN_CHANNELS = 32
D_MODEL = 32
N_HEAD = 4
D_HEAD = D_MODEL // N_HEAD
D_FFN = 64
N_LAYERS = 2
LN_EPS = 1e-5
NEG_INF = -1e9

VEC_W = 3 * D_MODEL        # width of the packed bias/LN slab (= fused QKV bias)
N_VEC_ROWS = 8             # bqkv, b1, bo, b2, g1, be1, g2, be2


# ---------------------------------------------------------------------------
# Pallas kernel (whole encoder stack, one batch element per grid step)
# ---------------------------------------------------------------------------
def _layer_norm(x, gamma, beta):
    mu = jnp.mean(x, axis=-1, keepdims=True)
    var = jnp.mean(jnp.square(x - mu), axis=-1, keepdims=True)
    return (x - mu) * lax.rsqrt(var + LN_EPS) * gamma + beta


def _split_heads(t):
    """(S, D_MODEL) -> (N_HEAD, S, D_HEAD), head axis leading (batched matmul)."""
    return jnp.stack(
        [t[:, h * D_HEAD:(h + 1) * D_HEAD] for h in range(N_HEAD)], axis=0)


def fused_encoder_kernel(x_ref, mask_ref, pe_b_ref, wp_ref,
                         wqkv_ref, wo_ref, w1_ref, w2_ref, vecs_ref,
                         out_ref):
    x_in = x_ref[0]                     # (S, Cin)  f32
    mask = mask_ref[0]                  # (1, S)    f32 additive key-padding mask

    # Input projection; proj bias + positional encoding pre-folded into pe_b.
    h = jnp.dot(x_in.astype(jnp.bfloat16), wp_ref[...],
                preferred_element_type=jnp.float32) + pe_b_ref[...]   # (S, D)

    scale = 1.0 / math.sqrt(D_HEAD)
    for l in range(N_LAYERS):
        wqkv = wqkv_ref[l]              # (D, 3D)  bf16
        wo = wo_ref[l]                  # (D, D)   bf16
        w1 = w1_ref[l]                  # (D, F)   bf16
        w2 = w2_ref[l]                  # (F, D)   bf16
        vec = vecs_ref[l]               # (8, 3D)  f32 packed bias / LN rows

        bqkv = vec[0:1, :]                       # (1, 3D)
        b1 = vec[1:2, 0:D_FFN]                   # (1, F)
        bo = vec[2:3, 0:D_MODEL]
        b2 = vec[3:4, 0:D_MODEL]
        g1 = vec[4:5, 0:D_MODEL]
        be1 = vec[5:6, 0:D_MODEL]
        g2 = vec[6:7, 0:D_MODEL]
        be2 = vec[7:8, 0:D_MODEL]

        # ---- Multi-head self-attention (fused QKV, head-batched) ----
        qkv = jnp.dot(h.astype(jnp.bfloat16), wqkv,
                      preferred_element_type=jnp.float32) + bqkv      # (S, 3D)
        qh = _split_heads(qkv[:, 0:D_MODEL])                          # (H,S,dh)
        kh = _split_heads(qkv[:, D_MODEL:2 * D_MODEL])
        vh = _split_heads(qkv[:, 2 * D_MODEL:3 * D_MODEL])

        s = jnp.einsum("hqd,hkd->hqk",
                       qh.astype(jnp.bfloat16), kh.astype(jnp.bfloat16),
                       preferred_element_type=jnp.float32) * scale    # (H,S,S)
        s = s + mask                               # mask padded keys (broadcast)
        m = jnp.max(s, axis=-1, keepdims=True)
        p = jnp.exp(s - m)
        p = p * pl.reciprocal(jnp.sum(p, axis=-1, keepdims=True), approx=True)

        o = jnp.einsum("hqk,hkd->hqd",
                       p.astype(jnp.bfloat16), vh.astype(jnp.bfloat16),
                       preferred_element_type=jnp.float32)            # (H,S,dh)
        o2d = jnp.concatenate([o[hh] for hh in range(N_HEAD)], axis=-1)  # (S,D)

        attn = jnp.dot(o2d.astype(jnp.bfloat16), wo,
                       preferred_element_type=jnp.float32) + bo

        # Residual + LayerNorm (post-norm, PyTorch default norm_first=False)
        x1 = _layer_norm(h + attn, g1, be1)

        # ---- FFN: ReLU(x1 @ W1 + b1) @ W2 + b2 ----
        h1 = jnp.dot(x1.astype(jnp.bfloat16), w1,
                     preferred_element_type=jnp.float32) + b1
        h1 = jnp.maximum(h1, 0.0)
        h2 = jnp.dot(h1.astype(jnp.bfloat16), w2,
                     preferred_element_type=jnp.float32) + b2

        h = _layer_norm(x1 + h2, g2, be2)

    out_ref[0] = h.astype(out_ref.dtype)


# ---------------------------------------------------------------------------
# pallas_call wrapper
# ---------------------------------------------------------------------------
def encoder_forward(x, add_mask, packed):
    in_specs = [
        pl.BlockSpec((1, SEQ, IN_CHANNELS), lambda b: (b, 0, 0)),            # x
        pl.BlockSpec((1, 1, SEQ), lambda b: (b, 0, 0)),                      # mask
        pl.BlockSpec((SEQ, D_MODEL), lambda b: (0, 0)),                      # pe + bp
        pl.BlockSpec((IN_CHANNELS, D_MODEL), lambda b: (0, 0)),              # wp
        pl.BlockSpec((N_LAYERS, D_MODEL, 3 * D_MODEL), lambda b: (0, 0, 0)),  # wqkv
        pl.BlockSpec((N_LAYERS, D_MODEL, D_MODEL), lambda b: (0, 0, 0)),      # wo
        pl.BlockSpec((N_LAYERS, D_MODEL, D_FFN), lambda b: (0, 0, 0)),        # w1
        pl.BlockSpec((N_LAYERS, D_FFN, D_MODEL), lambda b: (0, 0, 0)),        # w2
        pl.BlockSpec((N_LAYERS, N_VEC_ROWS, VEC_W), lambda b: (0, 0, 0)),     # vecs
    ]
    return pl.pallas_call(
        fused_encoder_kernel,
        out_shape=jax.ShapeDtypeStruct((BATCH, SEQ, D_MODEL), jnp.float32),
        grid=(BATCH,),
        in_specs=in_specs,
        out_specs=pl.BlockSpec((1, SEQ, D_MODEL), lambda b: (b, 0, 0)),
        compiler_params=pltpu.CompilerParams(
            dimension_semantics=("parallel",)),
    )(x, add_mask, packed["pe_b"], packed["wp"], packed["wqkv"],
      packed["wo"], packed["w1"], packed["w2"], packed["vecs"])


@jax.jit
def encoder_wrapper_forward(x, lengths, packed):
    """Pallas equivalent of EncoderWrapper.forward(x, lengths)."""
    B, S, _ = x.shape
    # src_key_padding_mask: True where padded -> additive -inf mask on keys.
    pad = jnp.arange(S)[None, :] >= lengths[:, None]                     # (B, S)
    add_mask = jnp.where(pad, NEG_INF, 0.0).astype(jnp.float32)[:, None, :]  # (B,1,S)
    return encoder_forward(x, add_mask, packed)                          # (B,S,D)


# ---------------------------------------------------------------------------
# Parameter construction + packing (plain JAX glue)
# ---------------------------------------------------------------------------
def sinusoidal_pe(seq_len, d_model):
    pos = jnp.arange(seq_len, dtype=jnp.float32)[:, None]
    i = jnp.arange(d_model // 2, dtype=jnp.float32)[None, :]
    div = jnp.exp(-math.log(10000.0) * (2.0 * i) / d_model)
    ang = pos * div
    pe = jnp.zeros((seq_len, d_model), jnp.float32)
    pe = pe.at[:, 0::2].set(jnp.sin(ang))
    pe = pe.at[:, 1::2].set(jnp.cos(ang))
    return pe


def _linear_init(key, fan_in, fan_out):
    kw, kb = jax.random.split(key)
    bound = 1.0 / math.sqrt(fan_in)
    w = jax.random.uniform(kw, (fan_in, fan_out), jnp.float32, -bound, bound)
    b = jax.random.uniform(kb, (fan_out,), jnp.float32, -bound, bound)
    return w, b


def init_params(key):
    keys = jax.random.split(key, 1 + N_LAYERS)
    wp, bp = _linear_init(keys[0], IN_CHANNELS, D_MODEL)
    layers = []
    for l in range(N_LAYERS):
        lk = jax.random.split(keys[1 + l], 6)
        wq, bq = _linear_init(lk[0], D_MODEL, D_MODEL)
        wk, bk = _linear_init(lk[1], D_MODEL, D_MODEL)
        wv, bv = _linear_init(lk[2], D_MODEL, D_MODEL)
        wo, bo = _linear_init(lk[3], D_MODEL, D_MODEL)
        w1, b1 = _linear_init(lk[4], D_MODEL, D_FFN)
        w2, b2 = _linear_init(lk[5], D_FFN, D_MODEL)
        layers.append(dict(
            wq=wq, bq=bq, wk=wk, bk=bk, wv=wv, bv=bv, wo=wo, bo=bo,
            w1=w1, b1=b1, w2=w2, b2=b2,
            g1=jnp.ones((D_MODEL,), jnp.float32),
            be1=jnp.zeros((D_MODEL,), jnp.float32),
            g2=jnp.ones((D_MODEL,), jnp.float32),
            be2=jnp.zeros((D_MODEL,), jnp.float32)))
    return (wp, bp), layers


def pack_params(proj_params, layer_params, pe):
    wp, bp = proj_params
    pe_b = (pe + bp[None, :]).astype(jnp.float32)      # fold proj bias into PE

    def pad_row(v):
        return jnp.pad(v, (0, VEC_W - v.shape[0]))

    wqkv, wo, w1, w2, vecs = [], [], [], [], []
    for p in layer_params:
        wqkv.append(jnp.concatenate([p["wq"], p["wk"], p["wv"]], axis=1))
        wo.append(p["wo"])
        w1.append(p["w1"])
        w2.append(p["w2"])
        bqkv = jnp.concatenate([p["bq"], p["bk"], p["bv"]], axis=0)
        vecs.append(jnp.stack(
            [pad_row(bqkv), pad_row(p["b1"]), pad_row(p["bo"]), pad_row(p["b2"]),
             pad_row(p["g1"]), pad_row(p["be1"]), pad_row(p["g2"]),
             pad_row(p["be2"])], axis=0))

    return dict(
        wp=wp.astype(jnp.bfloat16),
        pe_b=pe_b,
        wqkv=jnp.stack(wqkv).astype(jnp.bfloat16),
        wo=jnp.stack(wo).astype(jnp.bfloat16),
        w1=jnp.stack(w1).astype(jnp.bfloat16),
        w2=jnp.stack(w2).astype(jnp.bfloat16),
        vecs=jnp.stack(vecs).astype(jnp.float32),
    )


# ---------------------------------------------------------------------------
if __name__ == "__main__":
    key = jax.random.PRNGKey(0)
    k_x, k_p = jax.random.split(key)

    x = jax.random.normal(k_x, (BATCH, SEQ, IN_CHANNELS), jnp.float32)
    lengths = jnp.array([SEQ, SEQ - 6], dtype=jnp.int32)

    proj_params, layer_params = init_params(k_p)
    pe = sinusoidal_pe(SEQ, D_MODEL)
    packed = pack_params(proj_params, layer_params, pe)

    out = encoder_wrapper_forward(x, lengths, packed)
    out = jax.block_until_ready(out)

    assert out.shape == (BATCH, SEQ, D_MODEL)
    assert bool(jnp.all(jnp.isfinite(out)))
    print("KERNEL_OK")
</pallas_src>

<mosaic_0001>
module attributes {stable_mosaic.version = 11 : i64} {
  func.func @fused_encoder_kernel(%arg0: i32, %arg1: memref<1x16x32xf32, #tpu.memory_space<vmem>>, %arg2: memref<1x1x16xf32, #tpu.memory_space<vmem>>, %arg3: memref<16x32xf32, #tpu.memory_space<vmem>>, %arg4: memref<32x32xbf16, #tpu.memory_space<vmem>>, %arg5: memref<2x32x96xbf16, #tpu.memory_space<vmem>>, %arg6: memref<2x32x32xbf16, #tpu.memory_space<vmem>>, %arg7: memref<2x32x64xbf16, #tpu.memory_space<vmem>>, %arg8: memref<2x64x32xbf16, #tpu.memory_space<vmem>>, %arg9: memref<2x8x96xf32, #tpu.memory_space<vmem>>, %arg10: memref<1x16x32xf32, #tpu.memory_space<vmem>>) attributes {dimension_semantics = [#tpu.dimension_semantics<parallel>], iteration_bounds = array<i64: 2>, scalar_prefetch = 0 : i64, scratch_operands = 0 : i64, tpu.core_type = #tpu.core_type<tc>, window_params = [{transform_indices = @transform_0, window_bounds = array<i64: 1, 16, 32>}, {transform_indices = @transform_1, window_bounds = array<i64: 1, 1, 16>}, {pipeline_mode = #tpu.pipeline_mode<synchronous>, transform_indices = @transform_2, window_bounds = array<i64: 16, 32>}, {pipeline_mode = #tpu.pipeline_mode<synchronous>, transform_indices = @transform_3, window_bounds = array<i64: 32, 32>}, {pipeline_mode = #tpu.pipeline_mode<synchronous>, transform_indices = @transform_4, window_bounds = array<i64: 2, 32, 96>}, {pipeline_mode = #tpu.pipeline_mode<synchronous>, transform_indices = @transform_5, window_bounds = array<i64: 2, 32, 32>}, {pipeline_mode = #tpu.pipeline_mode<synchronous>, transform_indices = @transform_6, window_bounds = array<i64: 2, 32, 64>}, {pipeline_mode = #tpu.pipeline_mode<synchronous>, transform_indices = @transform_7, window_bounds = array<i64: 2, 64, 32>}, {pipeline_mode = #tpu.pipeline_mode<synchronous>, transform_indices = @transform_8, window_bounds = array<i64: 2, 8, 96>}, {transform_indices = @transform_9, window_bounds = array<i64: 1, 16, 32>}]} {
    %c0 = arith.constant 0 : index
    %c0_0 = arith.constant 0 : index
    %c0_1 = arith.constant 0 : index
    %0 = vector.load %arg1[%c0, %c0_0, %c0_1] : memref<1x16x32xf32, #tpu.memory_space<vmem>>, vector<1x16x32xf32>
    %1 = vector.shape_cast %0 : vector<1x16x32xf32> to vector<16x32xf32>
    %c0_2 = arith.constant 0 : index
    %c0_3 = arith.constant 0 : index
    %c0_4 = arith.constant 0 : index
    %2 = vector.load %arg2[%c0_2, %c0_3, %c0_4] : memref<1x1x16xf32, #tpu.memory_space<vmem>>, vector<1x1x16xf32>
    %3 = vector.shape_cast %2 : vector<1x1x16xf32> to vector<1x16xf32>
    %4 = arith.truncf %1 : vector<16x32xf32> to vector<16x32xbf16>
    %c0_5 = arith.constant 0 : index
    %c0_6 = arith.constant 0 : index
    %5 = vector.load %arg4[%c0_5, %c0_6] : memref<32x32xbf16, #tpu.memory_space<vmem>>, vector<32x32xbf16>
    %cst = arith.constant dense<0.000000e+00> : vector<16x32xf32>
    %6 = tpu.matmul %4, %5, %cst {dimension_numbers = #tpu.dot_dimension_numbers<[1], [0], [0], [1], [0, 0, 1, 1], [], []>} : vector<16x32xbf16>, vector<32x32xbf16>, vector<16x32xf32> -> vector<16x32xf32>
    %c0_7 = arith.constant 0 : index
    %c0_8 = arith.constant 0 : index
    %7 = vector.load %arg3[%c0_7, %c0_8] : memref<16x32xf32, #tpu.memory_space<vmem>>, vector<16x32xf32>
    %8 = arith.addf %6, %7 : vector<16x32xf32>
    %c0_9 = arith.constant 0 : index
    %c0_10 = arith.constant 0 : index
    %c0_11 = arith.constant 0 : index
    %9 = vector.load %arg5[%c0_9, %c0_10, %c0_11] : memref<2x32x96xbf16, #tpu.memory_space<vmem>>, vector<1x32x96xbf16>
    %10 = vector.shape_cast %9 : vector<1x32x96xbf16> to vector<32x96xbf16>
    %c0_12 = arith.constant 0 : index
    %c0_13 = arith.constant 0 : index
    %c0_14 = arith.constant 0 : index
    %11 = vector.load %arg6[%c0_12, %c0_13, %c0_14] : memref<2x32x32xbf16, #tpu.memory_space<vmem>>, vector<1x32x32xbf16>
    %12 = vector.shape_cast %11 : vector<1x32x32xbf16> to vector<32x32xbf16>
    %c0_15 = arith.constant 0 : index
    %c0_16 = arith.constant 0 : index
    %c0_17 = arith.constant 0 : index
    %13 = vector.load %arg7[%c0_15, %c0_16, %c0_17] : memref<2x32x64xbf16, #tpu.memory_space<vmem>>, vector<1x32x64xbf16>
    %14 = vector.shape_cast %13 : vector<1x32x64xbf16> to vector<32x64xbf16>
    %c0_18 = arith.constant 0 : index
    %c0_19 = arith.constant 0 : index
    %c0_20 = arith.constant 0 : index
    %15 = vector.load %arg8[%c0_18, %c0_19, %c0_20] : memref<2x64x32xbf16, #tpu.memory_space<vmem>>, vector<1x64x32xbf16>
    %16 = vector.shape_cast %15 : vector<1x64x32xbf16> to vector<64x32xbf16>
    %c0_21 = arith.constant 0 : index
    %c0_22 = arith.constant 0 : index
    %c0_23 = arith.constant 0 : index
    %17 = vector.load %arg9[%c0_21, %c0_22, %c0_23] : memref<2x8x96xf32, #tpu.memory_space<vmem>>, vector<1x8x96xf32>
    %18 = vector.shape_cast %17 : vector<1x8x96xf32> to vector<8x96xf32>
    %19 = vector.extract_strided_slice %18 {offsets = [0, 0], sizes = [1, 96], strides = [1, 1]} : vector<8x96xf32> to vector<1x96xf32>
    %20 = vector.extract_strided_slice %18 {offsets = [1, 0], sizes = [1, 64], strides = [1, 1]} : vector<8x96xf32> to vector<1x64xf32>
    %21 = vector.extract_strided_slice %18 {offsets = [2, 0], sizes = [1, 32], strides = [1, 1]} : vector<8x96xf32> to vector<1x32xf32>
    %22 = vector.extract_strided_slice %18 {offsets = [3, 0], sizes = [1, 32], strides = [1, 1]} : vector<8x96xf32> to vector<1x32xf32>
    %23 = vector.extract_strided_slice %18 {offsets = [4, 0], sizes = [1, 32], strides = [1, 1]} : vector<8x96xf32> to vector<1x32xf32>
    %24 = vector.extract_strided_slice %18 {offsets = [5, 0], sizes = [1, 32], strides = [1, 1]} : vector<8x96xf32> to vector<1x32xf32>
    %25 = vector.extract_strided_slice %18 {offsets = [6, 0], sizes = [1, 32], strides = [1, 1]} : vector<8x96xf32> to vector<1x32xf32>
    %26 = vector.extract_strided_slice %18 {offsets = [7, 0], sizes = [1, 32], strides = [1, 1]} : vector<8x96xf32> to vector<1x32xf32>
    %27 = arith.truncf %8 : vector<16x32xf32> to vector<16x32xbf16>
    %cst_24 = arith.constant dense<0.000000e+00> : vector<16x96xf32>
    %28 = tpu.matmul %27, %10, %cst_24 {dimension_numbers = #tpu.dot_dimension_numbers<[1], [0], [0], [1], [0, 0, 1, 1], [], []>} : vector<16x32xbf16>, vector<32x96xbf16>, vector<16x96xf32> -> vector<16x96xf32>
    %29 = vector.broadcast %19 : vector<1x96xf32> to vector<16x96xf32>
    %30 = arith.addf %28, %29 : vector<16x96xf32>
    %31 = vector.extract_strided_slice %30 {offsets = [0, 0], sizes = [16, 32], strides = [1, 1]} : vector<16x96xf32> to vector<16x32xf32>
    %32 = vector.extract_strided_slice %31 {offsets = [0, 0], sizes = [16, 8], strides = [1, 1]} : vector<16x32xf32> to vector<16x8xf32>
    %33 = vector.extract_strided_slice %31 {offsets = [0, 8], sizes = [16, 8], strides = [1, 1]} : vector<16x32xf32> to vector<16x8xf32>
    %34 = vector.extract_strided_slice %31 {offsets = [0, 16], sizes = [16, 8], strides = [1, 1]} : vector<16x32xf32> to vector<16x8xf32>
    %35 = vector.extract_strided_slice %31 {offsets = [0, 24], sizes = [16, 8], strides = [1, 1]} : vector<16x32xf32> to vector<16x8xf32>
    %36 = vector.shape_cast %32 : vector<16x8xf32> to vector<1x16x8xf32>
    %37 = vector.shape_cast %33 : vector<16x8xf32> to vector<1x16x8xf32>
    %38 = vector.shape_cast %34 : vector<16x8xf32> to vector<1x16x8xf32>
    %39 = vector.shape_cast %35 : vector<16x8xf32> to vector<1x16x8xf32>
    %40 = tpu.concatenate %36, %37, %38, %39 in 0 : vector<1x16x8xf32>, vector<1x16x8xf32>, vector<1x16x8xf32>, vector<1x16x8xf32> -> vector<4x16x8xf32>
    %41 = vector.extract_strided_slice %30 {offsets = [0, 32], sizes = [16, 32], strides = [1, 1]} : vector<16x96xf32> to vector<16x32xf32>
    %42 = vector.extract_strided_slice %41 {offsets = [0, 0], sizes = [16, 8], strides = [1, 1]} : vector<16x32xf32> to vector<16x8xf32>
    %43 = vector.extract_strided_slice %41 {offsets = [0, 8], sizes = [16, 8], strides = [1, 1]} : vector<16x32xf32> to vector<16x8xf32>
    %44 = vector.extract_strided_slice %41 {offsets = [0, 16], sizes = [16, 8], strides = [1, 1]} : vector<16x32xf32> to vector<16x8xf32>
    %45 = vector.extract_strided_slice %41 {offsets = [0, 24], sizes = [16, 8], strides = [1, 1]} : vector<16x32xf32> to vector<16x8xf32>
    %46 = vector.shape_cast %42 : vector<16x8xf32> to vector<1x16x8xf32>
    %47 = vector.shape_cast %43 : vector<16x8xf32> to vector<1x16x8xf32>
    %48 = vector.shape_cast %44 : vector<16x8xf32> to vector<1x16x8xf32>
    %49 = vector.shape_cast %45 : vector<16x8xf32> to vector<1x16x8xf32>
    %50 = tpu.concatenate %46, %47, %48, %49 in 0 : vector<1x16x8xf32>, vector<1x16x8xf32>, vector<1x16x8xf32>, vector<1x16x8xf32> -> vector<4x16x8xf32>
    %51 = vector.extract_strided_slice %30 {offsets = [0, 64], sizes = [16, 32], strides = [1, 1]} : vector<16x96xf32> to vector<16x32xf32>
    %52 = vector.extract_strided_slice %51 {offsets = [0, 0], sizes = [16, 8], strides = [1, 1]} : vector<16x32xf32> to vector<16x8xf32>
    %53 = vector.extract_strided_slice %51 {offsets = [0, 8], sizes = [16, 8], strides = [1, 1]} : vector<16x32xf32> to vector<16x8xf32>
    %54 = vector.extract_strided_slice %51 {offsets = [0, 16], sizes = [16, 8], strides = [1, 1]} : vector<16x32xf32> to vector<16x8xf32>
    %55 = vector.extract_strided_slice %51 {offsets = [0, 24], sizes = [16, 8], strides = [1, 1]} : vector<16x32xf32> to vector<16x8xf32>
    %56 = vector.shape_cast %52 : vector<16x8xf32> to vector<1x16x8xf32>
    %57 = vector.shape_cast %53 : vector<16x8xf32> to vector<1x16x8xf32>
    %58 = vector.shape_cast %54 : vector<16x8xf32> to vector<1x16x8xf32>
    %59 = vector.shape_cast %55 : vector<16x8xf32> to vector<1x16x8xf32>
    %60 = tpu.concatenate %56, %57, %58, %59 in 0 : vector<1x16x8xf32>, vector<1x16x8xf32>, vector<1x16x8xf32>, vector<1x16x8xf32> -> vector<4x16x8xf32>
    %61 = arith.truncf %40 : vector<4x16x8xf32> to vector<4x16x8xbf16>
    %62 = arith.truncf %50 : vector<4x16x8xf32> to vector<4x16x8xbf16>
    "tpu.trace_start"() <{level = 10 : i32, message = "hqd,hkd->hqk"}> : () -> ()
    %cst_25 = arith.constant dense<0.000000e+00> : vector<4x16x16xf32>
    %63 = tpu.matmul %61, %62, %cst_25 {dimension_numbers = #tpu.dot_dimension_numbers<[2], [2], [1], [1], [0, 0, 0, 1, 1, 1], [0], [0]>} : vector<4x16x8xbf16>, vector<4x16x8xbf16>, vector<4x16x16xf32> -> vector<4x16x16xf32>
    "tpu.trace_stop"() : () -> ()
    %cst_26 = arith.constant 0.353553385 : f32
    %64 = vector.broadcast %cst_26 : f32 to vector<4x16x16xf32>
    %65 = arith.mulf %63, %64 : vector<4x16x16xf32>
    %66 = vector.shape_cast %3 : vector<1x16xf32> to vector<1x1x16xf32>
    %67 = vector.broadcast %66 : vector<1x1x16xf32> to vector<4x16x16xf32>
    %68 = arith.addf %65, %67 : vector<4x16x16xf32>
    %cst_27 = arith.constant dense<0xFF800000> : vector<4x16xf32>
    %69 = vector.multi_reduction <maximumf>, %68, %cst_27 [2] : vector<4x16x16xf32> to vector<4x16xf32>
    %70 = vector.shape_cast %69 : vector<4x16xf32> to vector<4x16x1xf32>
    %71 = vector.broadcast %70 : vector<4x16x1xf32> to vector<4x16x16xf32>
    %72 = arith.subf %68, %71 : vector<4x16x16xf32>
    %73 = math.exp %72 : vector<4x16x16xf32>
    %cst_28 = arith.constant dense<0.000000e+00> : vector<4x16xf32>
    %74 = vector.multi_reduction <add>, %73, %cst_28 [2] : vector<4x16x16xf32> to vector<4x16xf32>
    %75 = vector.shape_cast %74 : vector<4x16xf32> to vector<4x16x1xf32>
    %76 = tpu.reciprocal %75 {approx = true} : vector<4x16x1xf32> -> vector<4x16x1xf32>
    %77 = vector.broadcast %76 : vector<4x16x1xf32> to vector<4x16x16xf32>
    %78 = arith.mulf %73, %77 : vector<4x16x16xf32>
    %79 = arith.truncf %78 : vector<4x16x16xf32> to vector<4x16x16xbf16>
    %80 = arith.truncf %60 : vector<4x16x8xf32> to vector<4x16x8xbf16>
    "tpu.trace_start"() <{level = 10 : i32, message = "hqk,hkd->hqd"}> : () -> ()
    %cst_29 = arith.constant dense<0.000000e+00> : vector<4x16x8xf32>
    %81 = tpu.matmul %79, %80, %cst_29 {dimension_numbers = #tpu.dot_dimension_numbers<[2], [1], [1], [2], [0, 0, 0, 1, 1, 2], [0], [0]>} : vector<4x16x16xbf16>, vector<4x16x8xbf16>, vector<4x16x8xf32> -> vector<4x16x8xf32>
    "tpu.trace_stop"() : () -> ()
    %82 = vector.extract_strided_slice %81 {offsets = [0, 0, 0], sizes = [1, 16, 8], strides = [1, 1, 1]} : vector<4x16x8xf32> to vector<1x16x8xf32>
    %83 = vector.shape_cast %82 : vector<1x16x8xf32> to vector<16x8xf32>
    %84 = vector.extract_strided_slice %81 {offsets = [1, 0, 0], sizes = [1, 16, 8], strides = [1, 1, 1]} : vector<4x16x8xf32> to vector<1x16x8xf32>
    %85 = vector.shape_cast %84 : vector<1x16x8xf32> to vector<16x8xf32>
    %86 = vector.extract_strided_slice %81 {offsets = [2, 0, 0], sizes = [1, 16, 8], strides = [1, 1, 1]} : vector<4x16x8xf32> to vector<1x16x8xf32>
    %87 = vector.shape_cast %86 : vector<1x16x8xf32> to vector<16x8xf32>
    %88 = vector.extract_strided_slice %81 {offsets = [3, 0, 0], sizes = [1, 16, 8], strides = [1, 1, 1]} : vector<4x16x8xf32> to vector<1x16x8xf32>
    %89 = vector.shape_cast %88 : vector<1x16x8xf32> to vector<16x8xf32>
    %90 = tpu.concatenate %83, %85, %87, %89 in 1 : vector<16x8xf32>, vector<16x8xf32>, vector<16x8xf32>, vector<16x8xf32> -> vector<16x32xf32>
    %91 = arith.truncf %90 : vector<16x32xf32> to vector<16x32xbf16>
    %cst_30 = arith.constant dense<0.000000e+00> : vector<16x32xf32>
    %92 = tpu.matmul %91, %12, %cst_30 {dimension_numbers = #tpu.dot_dimension_numbers<[1], [0], [0], [1], [0, 0, 1, 1], [], []>} : vector<16x32xbf16>, vector<32x32xbf16>, vector<16x32xf32> -> vector<16x32xf32>
    %93 = vector.broadcast %21 : vector<1x32xf32> to vector<16x32xf32>
    %94 = arith.addf %92, %93 : vector<16x32xf32>
    %95 = arith.addf %8, %94 : vector<16x32xf32>
    %cst_31 = arith.constant dense<0.000000e+00> : vector<16xf32>
    %96 = vector.multi_reduction <add>, %95, %cst_31 [1] : vector<16x32xf32> to vector<16xf32>
    %97 = vector.shape_cast %96 : vector<16xf32> to vector<16x1xf32>
    %cst_32 = arith.constant 3.200000e+01 : f32
    %98 = vector.broadcast %cst_32 : f32 to vector<16x1xf32>
    %99 = arith.divf %97, %98 : vector<16x1xf32>
    %100 = vector.broadcast %99 : vector<16x1xf32> to vector<16x32xf32>
    %101 = arith.subf %95, %100 : vector<16x32xf32>
    %102 = arith.mulf %101, %101 : vector<16x32xf32>
    %cst_33 = arith.constant dense<0.000000e+00> : vector<16xf32>
    %103 = vector.multi_reduction <add>, %102, %cst_33 [1] : vector<16x32xf32> to vector<16xf32>
    %104 = vector.shape_cast %103 : vector<16xf32> to vector<16x1xf32>
    %cst_34 = arith.constant 3.200000e+01 : f32
    %105 = vector.broadcast %cst_34 : f32 to vector<16x1xf32>
    %106 = arith.divf %104, %105 : vector<16x1xf32>
    %107 = vector.broadcast %99 : vector<16x1xf32> to vector<16x32xf32>
    %108 = arith.subf %95, %107 : vector<16x32xf32>
    %cst_35 = arith.constant 9.99999974E-6 : f32
    %109 = vector.broadcast %cst_35 : f32 to vector<16x1xf32>
    %110 = arith.addf %106, %109 : vector<16x1xf32>
    %111 = math.rsqrt %110 : vector<16x1xf32>
    %112 = vector.broadcast %111 : vector<16x1xf32> to vector<16x32xf32>
    %113 = arith.mulf %108, %112 : vector<16x32xf32>
    %114 = vector.broadcast %23 : vector<1x32xf32> to vector<16x32xf32>
    %115 = arith.mulf %113, %114 : vector<16x32xf32>
    %116 = vector.broadcast %24 : vector<1x32xf32> to vector<16x32xf32>
    %117 = arith.addf %115, %116 : vector<16x32xf32>
    %118 = arith.truncf %117 : vector<16x32xf32> to vector<16x32xbf16>
    %cst_36 = arith.constant dense<0.000000e+00> : vector<16x64xf32>
    %119 = tpu.matmul %118, %14, %cst_36 {dimension_numbers = #tpu.dot_dimension_numbers<[1], [0], [0], [1], [0, 0, 1, 1], [], []>} : vector<16x32xbf16>, vector<32x64xbf16>, vector<16x64xf32> -> vector<16x64xf32>
    %120 = vector.broadcast %20 : vector<1x64xf32> to vector<16x64xf32>
    %121 = arith.addf %119, %120 : vector<16x64xf32>
    %cst_37 = arith.constant 0.000000e+00 : f32
    %122 = vector.broadcast %cst_37 : f32 to vector<16x64xf32>
    %123 = arith.maximumf %121, %122 : vector<16x64xf32>
    %124 = arith.truncf %123 : vector<16x64xf32> to vector<16x64xbf16>
    %cst_38 = arith.constant dense<0.000000e+00> : vector<16x32xf32>
    %125 = tpu.matmul %124, %16, %cst_38 {dimension_numbers = #tpu.dot_dimension_numbers<[1], [0], [0], [1], [0, 0, 1, 1], [], []>} : vector<16x64xbf16>, vector<64x32xbf16>, vector<16x32xf32> -> vector<16x32xf32>
    %126 = vector.broadcast %22 : vector<1x32xf32> to vector<16x32xf32>
    %127 = arith.addf %125, %126 : vector<16x32xf32>
    %128 = arith.addf %117, %127 : vector<16x32xf32>
    %cst_39 = arith.constant dense<0.000000e+00> : vector<16xf32>
    %129 = vector.multi_reduction <add>, %128, %cst_39 [1] : vector<16x32xf32> to vector<16xf32>
    %130 = vector.shape_cast %129 : vector<16xf32> to vector<16x1xf32>
    %cst_40 = arith.constant 3.200000e+01 : f32
    %131 = vector.broadcast %cst_40 : f32 to vector<16x1xf32>
    %132 = arith.divf %130, %131 : vector<16x1xf32>
    %133 = vector.broadcast %132 : vector<16x1xf32> to vector<16x32xf32>
    %134 = arith.subf %128, %133 : vector<16x32xf32>
    %135 = arith.mulf %134, %134 : vector<16x32xf32>
    %cst_41 = arith.constant dense<0.000000e+00> : vector<16xf32>
    %136 = vector.multi_reduction <add>, %135, %cst_41 [1] : vector<16x32xf32> to vector<16xf32>
    %137 = vector.shape_cast %136 : vector<16xf32> to vector<16x1xf32>
    %cst_42 = arith.constant 3.200000e+01 : f32
    %138 = vector.broadcast %cst_42 : f32 to vector<16x1xf32>
    %139 = arith.divf %137, %138 : vector<16x1xf32>
    %140 = vector.broadcast %132 : vector<16x1xf32> to vector<16x32xf32>
    %141 = arith.subf %128, %140 : vector<16x32xf32>
    %cst_43 = arith.constant 9.99999974E-6 : f32
    %142 = vector.broadcast %cst_43 : f32 to vector<16x1xf32>
    %143 = arith.addf %139, %142 : vector<16x1xf32>
    %144 = math.rsqrt %143 : vector<16x1xf32>
    %145 = vector.broadcast %144 : vector<16x1xf32> to vector<16x32xf32>
    %146 = arith.mulf %141, %145 : vector<16x32xf32>
    %147 = vector.broadcast %25 : vector<1x32xf32> to vector<16x32xf32>
    %148 = arith.mulf %146, %147 : vector<16x32xf32>
    %149 = vector.broadcast %26 : vector<1x32xf32> to vector<16x32xf32>
    %150 = arith.addf %148, %149 : vector<16x32xf32>
    %c1 = arith.constant 1 : index
    %c0_44 = arith.constant 0 : index
    %c0_45 = arith.constant 0 : index
    %151 = vector.load %arg5[%c1, %c0_44, %c0_45] : memref<2x32x96xbf16, #tpu.memory_space<vmem>>, vector<1x32x96xbf16>
    %152 = vector.shape_cast %151 : vector<1x32x96xbf16> to vector<32x96xbf16>
    %c1_46 = arith.constant 1 : index
    %c0_47 = arith.constant 0 : index
    %c0_48 = arith.constant 0 : index
    %153 = vector.load %arg6[%c1_46, %c0_47, %c0_48] : memref<2x32x32xbf16, #tpu.memory_space<vmem>>, vector<1x32x32xbf16>
    %154 = vector.shape_cast %153 : vector<1x32x32xbf16> to vector<32x32xbf16>
    %c1_49 = arith.constant 1 : index
    %c0_50 = arith.constant 0 : index
    %c0_51 = arith.constant 0 : index
    %155 = vector.load %arg7[%c1_49, %c0_50, %c0_51] : memref<2x32x64xbf16, #tpu.memory_space<vmem>>, vector<1x32x64xbf16>
    %156 = vector.shape_cast %155 : vector<1x32x64xbf16> to vector<32x64xbf16>
    %c1_52 = arith.constant 1 : index
    %c0_53 = arith.constant 0 : index
    %c0_54 = arith.constant 0 : index
    %157 = vector.load %arg8[%c1_52, %c0_53, %c0_54] : memref<2x64x32xbf16, #tpu.memory_space<vmem>>, vector<1x64x32xbf16>
    %158 = vector.shape_cast %157 : vector<1x64x32xbf16> to vector<64x32xbf16>
    %c1_55 = arith.constant 1 : index
    %c0_56 = arith.constant 0 : index
    %c0_57 = arith.constant 0 : index
    %159 = vector.load %arg9[%c1_55, %c0_56, %c0_57] : memref<2x8x96xf32, #tpu.memory_space<vmem>>, vector<1x8x96xf32>
    %160 = vector.shape_cast %159 : vector<1x8x96xf32> to vector<8x96xf32>
    %161 = vector.extract_strided_slice %160 {offsets = [0, 0], sizes = [1, 96], strides = [1, 1]} : vector<8x96xf32> to vector<1x96xf32>
    %162 = vector.extract_strided_slice %160 {offsets = [1, 0], sizes = [1, 64], strides = [1, 1]} : vector<8x96xf32> to vector<1x64xf32>
    %163 = vector.extract_strided_slice %160 {offsets = [2, 0], sizes = [1, 32], strides = [1, 1]} : vector<8x96xf32> to vector<1x32xf32>
    %164 = vector.extract_strided_slice %160 {offsets = [3, 0], sizes = [1, 32], strides = [1, 1]} : vector<8x96xf32> to vector<1x32xf32>
    %165 = vector.extract_strided_slice %160 {offsets = [4, 0], sizes = [1, 32], strides = [1, 1]} : vector<8x96xf32> to vector<1x32xf32>
    %166 = vector.extract_strided_slice %160 {offsets = [5, 0], sizes = [1, 32], strides = [1, 1]} : vector<8x96xf32> to vector<1x32xf32>
    %167 = vector.extract_strided_slice %160 {offsets = [6, 0], sizes = [1, 32], strides = [1, 1]} : vector<8x96xf32> to vector<1x32xf32>
    %168 = vector.extract_strided_slice %160 {offsets = [7, 0], sizes = [1, 32], strides = [1, 1]} : vector<8x96xf32> to vector<1x32xf32>
    %169 = arith.truncf %150 : vector<16x32xf32> to vector<16x32xbf16>
    %cst_58 = arith.constant dense<0.000000e+00> : vector<16x96xf32>
    %170 = tpu.matmul %169, %152, %cst_58 {dimension_numbers = #tpu.dot_dimension_numbers<[1], [0], [0], [1], [0, 0, 1, 1], [], []>} : vector<16x32xbf16>, vector<32x96xbf16>, vector<16x96xf32> -> vector<16x96xf32>
    %171 = vector.broadcast %161 : vector<1x96xf32> to vector<16x96xf32>
    %172 = arith.addf %170, %171 : vector<16x96xf32>
    %173 = vector.extract_strided_slice %172 {offsets = [0, 0], sizes = [16, 32], strides = [1, 1]} : vector<16x96xf32> to vector<16x32xf32>
    %174 = vector.extract_strided_slice %173 {offsets = [0, 0], sizes = [16, 8], strides = [1, 1]} : vector<16x32xf32> to vector<16x8xf32>
    %175 = vector.extract_strided_slice %173 {offsets = [0, 8], sizes = [16, 8], strides = [1, 1]} : vector<16x32xf32> to vector<16x8xf32>
    %176 = vector.extract_strided_slice %173 {offsets = [0, 16], sizes = [16, 8], strides = [1, 1]} : vector<16x32xf32> to vector<16x8xf32>
    %177 = vector.extract_strided_slice %173 {offsets = [0, 24], sizes = [16, 8], strides = [1, 1]} : vector<16x32xf32> to vector<16x8xf32>
    %178 = vector.shape_cast %174 : vector<16x8xf32> to vector<1x16x8xf32>
    %179 = vector.shape_cast %175 : vector<16x8xf32> to vector<1x16x8xf32>
    %180 = vector.shape_cast %176 : vector<16x8xf32> to vector<1x16x8xf32>
    %181 = vector.shape_cast %177 : vector<16x8xf32> to vector<1x16x8xf32>
    %182 = tpu.concatenate %178, %179, %180, %181 in 0 : vector<1x16x8xf32>, vector<1x16x8xf32>, vector<1x16x8xf32>, vector<1x16x8xf32> -> vector<4x16x8xf32>
    %183 = vector.extract_strided_slice %172 {offsets = [0, 32], sizes = [16, 32], strides = [1, 1]} : vector<16x96xf32> to vector<16x32xf32>
    %184 = vector.extract_strided_slice %183 {offsets = [0, 0], sizes = [16, 8], strides = [1, 1]} : vector<16x32xf32> to vector<16x8xf32>
    %185 = vector.extract_strided_slice %183 {offsets = [0, 8], sizes = [16, 8], strides = [1, 1]} : vector<16x32xf32> to vector<16x8xf32>
    %186 = vector.extract_strided_slice %183 {offsets = [0, 16], sizes = [16, 8], strides = [1, 1]} : vector<16x32xf32> to vector<16x8xf32>
    %187 = vector.extract_strided_slice %183 {offsets = [0, 24], sizes = [16, 8], strides = [1, 1]} : vector<16x32xf32> to vector<16x8xf32>
    %188 = vector.shape_cast %184 : vector<16x8xf32> to vector<1x16x8xf32>
    %189 = vector.shape_cast %185 : vector<16x8xf32> to vector<1x16x8xf32>
    %190 = vector.shape_cast %186 : vector<16x8xf32> to vector<1x16x8xf32>
    %191 = vector.shape_cast %187 : vector<16x8xf32> to vector<1x16x8xf32>
    %192 = tpu.concatenate %188, %189, %190, %191 in 0 : vector<1x16x8xf32>, vector<1x16x8xf32>, vector<1x16x8xf32>, vector<1x16x8xf32> -> vector<4x16x8xf32>
    %193 = vector.extract_strided_slice %172 {offsets = [0, 64], sizes = [16, 32], strides = [1, 1]} : vector<16x96xf32> to vector<16x32xf32>
    %194 = vector.extract_strided_slice %193 {offsets = [0, 0], sizes = [16, 8], strides = [1, 1]} : vector<16x32xf32> to vector<16x8xf32>
    %195 = vector.extract_strided_slice %193 {offsets = [0, 8], sizes = [16, 8], strides = [1, 1]} : vector<16x32xf32> to vector<16x8xf32>
    %196 = vector.extract_strided_slice %193 {offsets = [0, 16], sizes = [16, 8], strides = [1, 1]} : vector<16x32xf32> to vector<16x8xf32>
    %197 = vector.extract_strided_slice %193 {offsets = [0, 24], sizes = [16, 8], strides = [1, 1]} : vector<16x32xf32> to vector<16x8xf32>
    %198 = vector.shape_cast %194 : vector<16x8xf32> to vector<1x16x8xf32>
    %199 = vector.shape_cast %195 : vector<16x8xf32> to vector<1x16x8xf32>
    %200 = vector.shape_cast %196 : vector<16x8xf32> to vector<1x16x8xf32>
    %201 = vector.shape_cast %197 : vector<16x8xf32> to vector<1x16x8xf32>
    %202 = tpu.concatenate %198, %199, %200, %201 in 0 : vector<1x16x8xf32>, vector<1x16x8xf32>, vector<1x16x8xf32>, vector<1x16x8xf32> -> vector<4x16x8xf32>
    %203 = arith.truncf %182 : vector<4x16x8xf32> to vector<4x16x8xbf16>
    %204 = arith.truncf %192 : vector<4x16x8xf32> to vector<4x16x8xbf16>
    "tpu.trace_start"() <{level = 10 : i32, message = "hqd,hkd->hqk"}> : () -> ()
    %cst_59 = arith.constant dense<0.000000e+00> : vector<4x16x16xf32>
    %205 = tpu.matmul %203, %204, %cst_59 {dimension_numbers = #tpu.dot_dimension_numbers<[2], [2], [1], [1], [0, 0, 0, 1, 1, 1], [0], [0]>} : vector<4x16x8xbf16>, vector<4x16x8xbf16>, vector<4x16x16xf32> -> vector<4x16x16xf32>
    "tpu.trace_stop"() : () -> ()
    %cst_60 = arith.constant 0.353553385 : f32
    %206 = vector.broadcast %cst_60 : f32 to vector<4x16x16xf32>
    %207 = arith.mulf %205, %206 : vector<4x16x16xf32>
    %208 = vector.shape_cast %3 : vector<1x16xf32> to vector<1x1x16xf32>
    %209 = vector.broadcast %208 : vector<1x1x16xf32> to vector<4x16x16xf32>
    %210 = arith.addf %207, %209 : vector<4x16x16xf32>
    %cst_61 = arith.constant dense<0xFF800000> : vector<4x16xf32>
    %211 = vector.multi_reduction <maximumf>, %210, %cst_61 [2] : vector<4x16x16xf32> to vector<4x16xf32>
    %212 = vector.shape_cast %211 : vector<4x16xf32> to vector<4x16x1xf32>
    %213 = vector.broadcast %212 : vector<4x16x1xf32> to vector<4x16x16xf32>
    %214 = arith.subf %210, %213 : vector<4x16x16xf32>
    %215 = math.exp %214 : vector<4x16x16xf32>
    %cst_62 = arith.constant dense<0.000000e+00> : vector<4x16xf32>
    %216 = vector.multi_reduction <add>, %215, %cst_62 [2] : vector<4x16x16xf32> to vector<4x16xf32>
    %217 = vector.shape_cast %216 : vector<4x16xf32> to vector<4x16x1xf32>
    %218 = tpu.reciprocal %217 {approx = true} : vector<4x16x1xf32> -> vector<4x16x1xf32>
    %219 = vector.broadcast %218 : vector<4x16x1xf32> to vector<4x16x16xf32>
    %220 = arith.mulf %215, %219 : vector<4x16x16xf32>
    %221 = arith.truncf %220 : vector<4x16x16xf32> to vector<4x16x16xbf16>
    %222 = arith.truncf %202 : vector<4x16x8xf32> to vector<4x16x8xbf16>
    "tpu.trace_start"() <{level = 10 : i32, message = "hqk,hkd->hqd"}> : () -> ()
    %cst_63 = arith.constant dense<0.000000e+00> : vector<4x16x8xf32>
    %223 = tpu.matmul %221, %222, %cst_63 {dimension_numbers = #tpu.dot_dimension_numbers<[2], [1], [1], [2], [0, 0, 0, 1, 1, 2], [0], [0]>} : vector<4x16x16xbf16>, vector<4x16x8xbf16>, vector<4x16x8xf32> -> vector<4x16x8xf32>
    "tpu.trace_stop"() : () -> ()
    %224 = vector.extract_strided_slice %223 {offsets = [0, 0, 0], sizes = [1, 16, 8], strides = [1, 1, 1]} : vector<4x16x8xf32> to vector<1x16x8xf32>
    %225 = vector.shape_cast %224 : vector<1x16x8xf32> to vector<16x8xf32>
    %226 = vector.extract_strided_slice %223 {offsets = [1, 0, 0], sizes = [1, 16, 8], strides = [1, 1, 1]} : vector<4x16x8xf32> to vector<1x16x8xf32>
    %227 = vector.shape_cast %226 : vector<1x16x8xf32> to vector<16x8xf32>
    %228 = vector.extract_strided_slice %223 {offsets = [2, 0, 0], sizes = [1, 16, 8], strides = [1, 1, 1]} : vector<4x16x8xf32> to vector<1x16x8xf32>
    %229 = vector.shape_cast %228 : vector<1x16x8xf32> to vector<16x8xf32>
    %230 = vector.extract_strided_slice %223 {offsets = [3, 0, 0], sizes = [1, 16, 8], strides = [1, 1, 1]} : vector<4x16x8xf32> to vector<1x16x8xf32>
    %231 = vector.shape_cast %230 : vector<1x16x8xf32> to vector<16x8xf32>
    %232 = tpu.concatenate %225, %227, %229, %231 in 1 : vector<16x8xf32>, vector<16x8xf32>, vector<16x8xf32>, vector<16x8xf32> -> vector<16x32xf32>
    %233 = arith.truncf %232 : vector<16x32xf32> to vector<16x32xbf16>
    %cst_64 = arith.constant dense<0.000000e+00> : vector<16x32xf32>
    %234 = tpu.matmul %233, %154, %cst_64 {dimension_numbers = #tpu.dot_dimension_numbers<[1], [0], [0], [1], [0, 0, 1, 1], [], []>} : vector<16x32xbf16>, vector<32x32xbf16>, vector<16x32xf32> -> vector<16x32xf32>
    %235 = vector.broadcast %163 : vector<1x32xf32> to vector<16x32xf32>
    %236 = arith.addf %234, %235 : vector<16x32xf32>
    %237 = arith.addf %150, %236 : vector<16x32xf32>
    %cst_65 = arith.constant dense<0.000000e+00> : vector<16xf32>
    %238 = vector.multi_reduction <add>, %237, %cst_65 [1] : vector<16x32xf32> to vector<16xf32>
    %239 = vector.shape_cast %238 : vector<16xf32> to vector<16x1xf32>
    %cst_66 = arith.constant 3.200000e+01 : f32
    %240 = vector.broadcast %cst_66 : f32 to vector<16x1xf32>
    %241 = arith.divf %239, %240 : vector<16x1xf32>
    %242 = vector.broadcast %241 : vector<16x1xf32> to vector<16x32xf32>
    %243 = arith.subf %237, %242 : vector<16x32xf32>
    %244 = arith.mulf %243, %243 : vector<16x32xf32>
    %cst_67 = arith.constant dense<0.000000e+00> : vector<16xf32>
    %245 = vector.multi_reduction <add>, %244, %cst_67 [1] : vector<16x32xf32> to vector<16xf32>
    %246 = vector.shape_cast %245 : vector<16xf32> to vector<16x1xf32>
    %cst_68 = arith.constant 3.200000e+01 : f32
    %247 = vector.broadcast %cst_68 : f32 to vector<16x1xf32>
    %248 = arith.divf %246, %247 : vector<16x1xf32>
    %249 = vector.broadcast %241 : vector<16x1xf32> to vector<16x32xf32>
    %250 = arith.subf %237, %249 : vector<16x32xf32>
    %cst_69 = arith.constant 9.99999974E-6 : f32
    %251 = vector.broadcast %cst_69 : f32 to vector<16x1xf32>
    %252 = arith.addf %248, %251 : vector<16x1xf32>
    %253 = math.rsqrt %252 : vector<16x1xf32>
    %254 = vector.broadcast %253 : vector<16x1xf32> to vector<16x32xf32>
    %255 = arith.mulf %250, %254 : vector<16x32xf32>
    %256 = vector.broadcast %165 : vector<1x32xf32> to vector<16x32xf32>
    %257 = arith.mulf %255, %256 : vector<16x32xf32>
    %258 = vector.broadcast %166 : vector<1x32xf32> to vector<16x32xf32>
    %259 = arith.addf %257, %258 : vector<16x32xf32>
    %260 = arith.truncf %259 : vector<16x32xf32> to vector<16x32xbf16>
    %cst_70 = arith.constant dense<0.000000e+00> : vector<16x64xf32>
    %261 = tpu.matmul %260, %156, %cst_70 {dimension_numbers = #tpu.dot_dimension_numbers<[1], [0], [0], [1], [0, 0, 1, 1], [], []>} : vector<16x32xbf16>, vector<32x64xbf16>, vector<16x64xf32> -> vector<16x64xf32>
    %262 = vector.broadcast %162 : vector<1x64xf32> to vector<16x64xf32>
    %263 = arith.addf %261, %262 : vector<16x64xf32>
    %cst_71 = arith.constant 0.000000e+00 : f32
    %264 = vector.broadcast %cst_71 : f32 to vector<16x64xf32>
    %265 = arith.maximumf %263, %264 : vector<16x64xf32>
    %266 = arith.truncf %265 : vector<16x64xf32> to vector<16x64xbf16>
    %cst_72 = arith.constant dense<0.000000e+00> : vector<16x32xf32>
    %267 = tpu.matmul %266, %158, %cst_72 {dimension_numbers = #tpu.dot_dimension_numbers<[1], [0], [0], [1], [0, 0, 1, 1], [], []>} : vector<16x64xbf16>, vector<64x32xbf16>, vector<16x32xf32> -> vector<16x32xf32>
    %268 = vector.broadcast %164 : vector<1x32xf32> to vector<16x32xf32>
    %269 = arith.addf %267, %268 : vector<16x32xf32>
    %270 = arith.addf %259, %269 : vector<16x32xf32>
    %cst_73 = arith.constant dense<0.000000e+00> : vector<16xf32>
    %271 = vector.multi_reduction <add>, %270, %cst_73 [1] : vector<16x32xf32> to vector<16xf32>
    %272 = vector.shape_cast %271 : vector<16xf32> to vector<16x1xf32>
    %cst_74 = arith.constant 3.200000e+01 : f32
    %273 = vector.broadcast %cst_74 : f32 to vector<16x1xf32>
    %274 = arith.divf %272, %273 : vector<16x1xf32>
    %275 = vector.broadcast %274 : vector<16x1xf32> to vector<16x32xf32>
    %276 = arith.subf %270, %275 : vector<16x32xf32>
    %277 = arith.mulf %276, %276 : vector<16x32xf32>
    %cst_75 = arith.constant dense<0.000000e+00> : vector<16xf32>
    %278 = vector.multi_reduction <add>, %277, %cst_75 [1] : vector<16x32xf32> to vector<16xf32>
    %279 = vector.shape_cast %278 : vector<16xf32> to vector<16x1xf32>
    %cst_76 = arith.constant 3.200000e+01 : f32
    %280 = vector.broadcast %cst_76 : f32 to vector<16x1xf32>
    %281 = arith.divf %279, %280 : vector<16x1xf32>
    %282 = vector.broadcast %274 : vector<16x1xf32> to vector<16x32xf32>
    %283 = arith.subf %270, %282 : vector<16x32xf32>
    %cst_77 = arith.constant 9.99999974E-6 : f32
    %284 = vector.broadcast %cst_77 : f32 to vector<16x1xf32>
    %285 = arith.addf %281, %284 : vector<16x1xf32>
    %286 = math.rsqrt %285 : vector<16x1xf32>
    %287 = vector.broadcast %286 : vector<16x1xf32> to vector<16x32xf32>
    %288 = arith.mulf %283, %287 : vector<16x32xf32>
    %289 = vector.broadcast %167 : vector<1x32xf32> to vector<16x32xf32>
    %290 = arith.mulf %288, %289 : vector<16x32xf32>
    %291 = vector.broadcast %168 : vector<1x32xf32> to vector<16x32xf32>
    %292 = arith.addf %290, %291 : vector<16x32xf32>
    %c0_78 = arith.constant 0 : index
    %c0_79 = arith.constant 0 : index
    %c0_80 = arith.constant 0 : index
    %293 = vector.load %arg10[%c0_78, %c0_79, %c0_80] : memref<1x16x32xf32, #tpu.memory_space<vmem>>, vector<1x16x32xf32>
    %294 = vector.shape_cast %293 : vector<1x16x32xf32> to vector<16x32xf32>
    %295 = vector.shape_cast %292 : vector<16x32xf32> to vector<1x16x32xf32>
    tpu.vector_store %arg10[%c0_78, %c0_79, %c0_80], %295 {strides = array<i32>} : memref<1x16x32xf32, #tpu.memory_space<vmem>>, vector<1x16x32xf32>,
    return
  }
  func.func @transform_0(%arg0: i32) -> (i32, i32, i32) {
    %c0_i32 = arith.constant 0 : i32
    %c0_i32_0 = arith.constant 0 : i32
    %c0_i32_1 = arith.constant 0 : i32
    return %arg0, %c0_i32, %c0_i32_0 : i32, i32, i32
  }
  func.func @transform_1(%arg0: i32) -> (i32, i32, i32) {
    %c0_i32 = arith.constant 0 : i32
    %c0_i32_0 = arith.constant 0 : i32
    %c0_i32_1 = arith.constant 0 : i32
    return %arg0, %c0_i32, %c0_i32_0 : i32, i32, i32
  }
  func.func @transform_2(%arg0: i32) -> (i32, i32) {
    %c0_i32 = arith.constant 0 : i32
    %c0_i32_0 = arith.constant 0 : i32
    %c0_i32_1 = arith.constant 0 : i32
    return %c0_i32, %c0_i32_0 : i32, i32
  }
  func.func @transform_3(%arg0: i32) -> (i32, i32) {
    %c0_i32 = arith.constant 0 : i32
    %c0_i32_0 = arith.constant 0 : i32
    %c0_i32_1 = arith.constant 0 : i32
    return %c0_i32, %c0_i32_0 : i32, i32
  }
  func.func @transform_4(%arg0: i32) -> (i32, i32, i32) {
    %c0_i32 = arith.constant 0 : i32
    %c0_i32_0 = arith.constant 0 : i32
    %c0_i32_1 = arith.constant 0 : i32
    %c0_i32_2 = arith.constant 0 : i32
    return %c0_i32, %c0_i32_0, %c0_i32_1 : i32, i32, i32
  }
  func.func @transform_5(%arg0: i32) -> (i32, i32, i32) {
    %c0_i32 = arith.constant 0 : i32
    %c0_i32_0 = arith.constant 0 : i32
    %c0_i32_1 = arith.constant 0 : i32
    %c0_i32_2 = arith.constant 0 : i32
    return %c0_i32, %c0_i32_0, %c0_i32_1 : i32, i32, i32
  }
  func.func @transform_6(%arg0: i32) -> (i32, i32, i32) {
    %c0_i32 = arith.constant 0 : i32
    %c0_i32_0 = arith.constant 0 : i32
    %c0_i32_1 = arith.constant 0 : i32
    %c0_i32_2 = arith.constant 0 : i32
    return %c0_i32, %c0_i32_0, %c0_i32_1 : i32, i32, i32
  }
  func.func @transform_7(%arg0: i32) -> (i32, i32, i32) {
    %c0_i32 = arith.constant 0 : i32
    %c0_i32_0 = arith.constant 0 : i32
    %c0_i32_1 = arith.constant 0 : i32
    %c0_i32_2 = arith.constant 0 : i32
    return %c0_i32, %c0_i32_0, %c0_i32_1 : i32, i32, i32
  }
  func.func @transform_8(%arg0: i32) -> (i32, i32, i32) {
    %c0_i32 = arith.constant 0 : i32
    %c0_i32_0 = arith.constant 0 : i32
    %c0_i32_1 = arith.constant 0 : i32
    %c0_i32_2 = arith.constant 0 : i32
    return %c0_i32, %c0_i32_0, %c0_i32_1 : i32, i32, i32
  }
  func.func @transform_9(%arg0: i32) -> (i32, i32, i32) {
    %c0_i32 = arith.constant 0 : i32
    %c0_i32_0 = arith.constant 0 : i32
    %c0_i32_1 = arith.constant 0 : i32
    return %arg0, %c0_i32, %c0_i32_0 : i32, i32, i32
  }
}

</mosaic_0001>

<llo_original>
// kernel: encoder_wrapper_forward.1
$region0: #{encoder_wrapper_forward.1}
  #allocation0 [shape = 'u32[]', space=smem, size = 0x4, offset = 0x4, fixed_abs, tag = 'smem constant byte address 0x4 - core index']
  #allocation1 [shape = 'u32[144,128]{1,0:T(1,128)}', space=vmem, size = 0x12000, scoped, tag = 'internal scratch']
  %s0 = inlined_call_operand.vmem [shape: f32[2,16,32], index: 0, kind: input, shape index: {}]
  %s1 = inlined_call_operand.vmem [shape: f32[2,1,16], index: 1, kind: input, shape index: {}]
  %s2 = inlined_call_operand.hbm [shape: f32[16,32], index: 2, kind: input, shape index: {}]
  %s3 = inlined_call_operand.hbm [shape: bf16[32,32], index: 3, kind: input, shape index: {}]
  %s4 = inlined_call_operand.vmem [shape: bf16[2,32,96], index: 4, kind: input, shape index: {}]
  %s5 = inlined_call_operand.vmem [shape: bf16[2,32,32], index: 5, kind: input, shape index: {}]
  %s6 = inlined_call_operand.hbm [shape: bf16[2,32,64], index: 6, kind: input, shape index: {}]
  %s7 = inlined_call_operand.vmem [shape: bf16[2,64,32], index: 7, kind: input, shape index: {}]
  %s8 = inlined_call_operand.hbm [shape: f32[2,8,96], index: 8, kind: input, shape index: {}]
  %s9 = inlined_call_operand.hbm [shape: f32[2,16,32], index: 9, kind: output, shape index: {}]
  %s10 = sld [smem:[#allocation0]]
  $region85: #{encoder_wrapper_forward.1} parent=0
    _
  %s12 = ssub.s32 1, %s10
  %s13 = scalar_select 0, %s12, %s10
  $region1: #{encoder_wrapper_forward.1} parent=0
    #allocation2 [shape = 'u8[8192]{0}', space=vmem, size = 0x2000, scoped, tag = 'input window, operand 2, single buffered']
    #allocation3 [shape = 's32[2]{0}', space=sflag, size = 0x8, scoped, tag = 'scoped memory for encoder_wrapper_forward.1']
    #allocation4 [shape = 's32[2]{0}', space=sflag, size = 0x8, scoped, tag = 'scoped memory for encoder_wrapper_forward.1']
    #allocation5 [shape = 'u8[8192]{0}', space=vmem, size = 0x2000, scoped, tag = 'input window, operand 3, single buffered']
    #allocation6 [shape = 's32[1]{0}', space=sflag, size = 0x4, scoped, tag = 'scoped memory for encoder_wrapper_forward.1']
    #allocation7 [shape = 'u8[16384]{0}', space=vmem, size = 0x4000, scoped, tag = 'input window, operand 6, single buffered']
    #allocation8 [shape = 'u8[8192]{0}', space=vmem, size = 0x2000, scoped, tag = 'input window, operand 8, single buffered']
    #allocation9 [shape = 's32[1]{0}', space=sflag, size = 0x4, scoped, tag = 'scoped memory for encoder_wrapper_forward.1']
    #allocation10 [shape = 'u8[16384]{0}', space=vmem, size = 0x4000, scoped, tag = 'output window, operand 0']
    %14 = vsyncpa [#allocation3], 0
    %15 = vsyncpa [#allocation6], 0
    %16 = vsyncpa [#allocation9], 0
    %17 = vsyncpa [#allocation4], 0
    %s18 = scalar_lea.sflag [#allocation4], 1
    %19 = vsyncpa %s18, 0
    loop: start=0, step=1, limit=4
    $region2: #{encoder_wrapper_forward.1} parent=1 // loop_pre_header
      _
    $region3: #{encoder_wrapper_forward.1} parent=1 // loop_header
      %s21 = sphi 0, %s25
      %p22 = scmp.ge.s32.totalorder %s21, 4
      %s31 = sphi 0, %s33
      %s34 = sphi 0, %s31
      %s35 = sphi 0, %s34
      %s51 = sphi 0, %s35
      %s57 = sphi 0, %s59
      %s60 = sphi 0, %s57
      %s61 = sphi 0, %s60
      %s77 = sphi 0, %s61
      %s81 = sphi 0, %s81
      %s83 = sphi 0, %s81
      %s84 = sphi 0, %s83
      %s98 = sphi 0, %s84
      %s102 = sphi 0, %s102
      %s104 = sphi 0, %s102
      %s105 = sphi 0, %s104
      %s119 = sphi 0, %s105
      %s123 = sphi 0, %s123
      %s125 = sphi 0, %s123
      %s126 = sphi 0, %s125
      %s140 = sphi 0, %s126
      %s144 = sphi 0, %s144
      %s146 = sphi 0, %s144
      %s147 = sphi 0, %s146
      %s161 = sphi 0, %s147
      %s165 = sphi 0, %s165
      %s167 = sphi 0, %s165
      %s168 = sphi 0, %s167
      %s182 = sphi 0, %s168
      %s186 = sphi 0, %s186
      %s188 = sphi 0, %s186
      %s189 = sphi 0, %s188
      %s203 = sphi 0, %s189
      %s207 = sphi 0, %s207
      %s209 = sphi 0, %s207
      %s210 = sphi 0, %s209
      %s224 = sphi 0, %s210
      %s230 = sphi 0, %s232
      %s233 = sphi 0, %s230
      %s234 = sphi 0, %s233
      %s250 = sphi 0, %s234
    $region4: #{encoder_wrapper_forward.1} parent=1 // loop_header_branch
      %24 = sbr.rel (%p22) target = $region8
    $region5: #{encoder_wrapper_forward.1} parent=1 // loop_body
      %s26 = ssub.s32 %s21, 1
      %s27 = ssub.s32 %s21, 2
      %s28 = sadd.s32 %s21, 1
      %s29 = ssub.s32 %s21, %s28
      %p30 = scmp.eq.s32.totalorder %s29, 0
      %s32 = sadd.s32 %s31, 1
      %s33 = scalar_select %p30, %s31, %s32
      %p36 = pneg %p30
      %p37 = scmp.eq.s32.totalorder %s21, 1
      %p38 = por %p36, %p37
      %p39 = scmp.ne.s32.totalorder %s31, %s34
      %p40 = scmp.eq.s32.totalorder %s21, 0
      %p41 = por %p39, %p40
      %p42 = scmp.ne.s32.totalorder %s31, %s34
      %p43 = scmp.eq.s32.totalorder %s26, 1
      %p44 = por %p42, %p43
      %p45 = scmp.ne.s32.totalorder %s34, %s35
      %p46 = scmp.eq.s32.totalorder %s26, 0
      %p47 = por %p45, %p46
      %p48 = scmp.ne.s32.totalorder %s34, %s35
      %p49 = scmp.eq.s32.totalorder %s27, 1
      %p50 = por %p48, %p49
      %p52 = scmp.ne.s32.totalorder %s35, %s51
      %p53 = scmp.eq.s32.totalorder %s27, 0
      %p54 = por %p52, %p53
      %s55 = ssub.s32 %s21, %s28
      %p56 = scmp.eq.s32.totalorder %s55, 0
      %s58 = sadd.s32 %s57, 1
      %s59 = scalar_select %p56, %s57, %s58
      %p62 = pneg %p56
      %p63 = scmp.eq.s32.totalorder %s21, 1
      %p64 = por %p62, %p63
      %p65 = scmp.ne.s32.totalorder %s57, %s60
      %p66 = scmp.eq.s32.totalorder %s21, 0
      %p67 = por %p65, %p66
      %p68 = scmp.ne.s32.totalorder %s57, %s60
      %p69 = scmp.eq.s32.totalorder %s26, 1
      %p70 = por %p68, %p69
      %p71 = scmp.ne.s32.totalorder %s60, %s61
      %p72 = scmp.eq.s32.totalorder %s26, 0
      %p73 = por %p71, %p72
      %p74 = scmp.ne.s32.totalorder %s60, %s61
      %p75 = scmp.eq.s32.totalorder %s27, 1
      %p76 = por %p74, %p75
      %p78 = scmp.ne.s32.totalorder %s61, %s77
      %p79 = scmp.eq.s32.totalorder %s27, 0
      %p80 = por %p78, %p79
      %s82 = sadd.s32 %s81, 1
      %p85 = scmp.eq.s32.totalorder %s21, 1
      %p86 = scmp.ne.s32.totalorder %s81, %s83
      %p87 = scmp.eq.s32.totalorder %s21, 0
      %p88 = por %p86, %p87
      %p89 = scmp.ne.s32.totalorder %s81, %s83
      %p90 = scmp.eq.s32.totalorder %s26, 1
      %p91 = por %p89, %p90
      %p92 = scmp.ne.s32.totalorder %s83, %s84
      %p93 = scmp.eq.s32.totalorder %s26, 0
      %p94 = por %p92, %p93
      %p95 = scmp.ne.s32.totalorder %s83, %s84
      %p96 = scmp.eq.s32.totalorder %s27, 1
      %p97 = por %p95, %p96
      %p99 = scmp.ne.s32.totalorder %s84, %s98
      %p100 = scmp.eq.s32.totalorder %s27, 0
      %p101 = por %p99, %p100
      %s103 = sadd.s32 %s102, 1
      %p106 = scmp.eq.s32.totalorder %s21, 1
      %p107 = scmp.ne.s32.totalorder %s102, %s104
      %p108 = scmp.eq.s32.totalorder %s21, 0
      %p109 = por %p107, %p108
      %p110 = scmp.ne.s32.totalorder %s102, %s104
      %p111 = scmp.eq.s32.totalorder %s26, 1
      %p112 = por %p110, %p111
      %p113 = scmp.ne.s32.totalorder %s104, %s105
      %p114 = scmp.eq.s32.totalorder %s26, 0
      %p115 = por %p113, %p114
      %p116 = scmp.ne.s32.totalorder %s104, %s105
      %p117 = scmp.eq.s32.totalorder %s27, 1
      %p118 = por %p116, %p117
      %p120 = scmp.ne.s32.totalorder %s105, %s119
      %p121 = scmp.eq.s32.totalorder %s27, 0
      %p122 = por %p120, %p121
      %s124 = sadd.s32 %s123, 1
      %p127 = scmp.eq.s32.totalorder %s21, 1
      %p128 = scmp.ne.s32.totalorder %s123, %s125
      %p129 = scmp.eq.s32.totalorder %s21, 0
      %p130 = por %p128, %p129
      %p131 = scmp.ne.s32.totalorder %s123, %s125
      %p132 = scmp.eq.s32.totalorder %s26, 1
      %p133 = por %p131, %p132
      %p134 = scmp.ne.s32.totalorder %s125, %s126
      %p135 = scmp.eq.s32.totalorder %s26, 0
      %p136 = por %p134, %p135
      %p137 = scmp.ne.s32.totalorder %s125, %s126
      %p138 = scmp.eq.s32.totalorder %s27, 1
      %p139 = por %p137, %p138
      %p141 = scmp.ne.s32.totalorder %s126, %s140
      %p142 = scmp.eq.s32.totalorder %s27, 0
      %p143 = por %p141, %p142
      %s145 = sadd.s32 %s144, 1
      %p148 = scmp.eq.s32.totalorder %s21, 1
      %p149 = scmp.ne.s32.totalorder %s144, %s146
      %p150 = scmp.eq.s32.totalorder %s21, 0
      %p151 = por %p149, %p150
      %p152 = scmp.ne.s32.totalorder %s144, %s146
      %p153 = scmp.eq.s32.totalorder %s26, 1
      %p154 = por %p152, %p153
      %p155 = scmp.ne.s32.totalorder %s146, %s147
      %p156 = scmp.eq.s32.totalorder %s26, 0
      %p157 = por %p155, %p156
      %p158 = scmp.ne.s32.totalorder %s146, %s147
      %p159 = scmp.eq.s32.totalorder %s27, 1
      %p160 = por %p158, %p159
      %p162 = scmp.ne.s32.totalorder %s147, %s161
      %p163 = scmp.eq.s32.totalorder %s27, 0
      %p164 = por %p162, %p163
      %s166 = sadd.s32 %s165, 1
      %p169 = scmp.eq.s32.totalorder %s21, 1
      %p170 = scmp.ne.s32.totalorder %s165, %s167
      %p171 = scmp.eq.s32.totalorder %s21, 0
      %p172 = por %p170, %p171
      %p173 = scmp.ne.s32.totalorder %s165, %s167
      %p174 = scmp.eq.s32.totalorder %s26, 1
      %p175 = por %p173, %p174
      %p176 = scmp.ne.s32.totalorder %s167, %s168
      %p177 = scmp.eq.s32.totalorder %s26, 0
      %p178 = por %p176, %p177
      %p179 = scmp.ne.s32.totalorder %s167, %s168
      %p180 = scmp.eq.s32.totalorder %s27, 1
      %p181 = por %p179, %p180
      %p183 = scmp.ne.s32.totalorder %s168, %s182
      %p184 = scmp.eq.s32.totalorder %s27, 0
      %p185 = por %p183, %p184
      %s187 = sadd.s32 %s186, 1
      %p190 = scmp.eq.s32.totalorder %s21, 1
      %p191 = scmp.ne.s32.totalorder %s186, %s188
      %p192 = scmp.eq.s32.totalorder %s21, 0
      %p193 = por %p191, %p192
      %p194 = scmp.ne.s32.totalorder %s186, %s188
      %p195 = scmp.eq.s32.totalorder %s26, 1
      %p196 = por %p194, %p195
      %p197 = scmp.ne.s32.totalorder %s188, %s189
      %p198 = scmp.eq.s32.totalorder %s26, 0
      %p199 = por %p197, %p198
      %p200 = scmp.ne.s32.totalorder %s188, %s189
      %p201 = scmp.eq.s32.totalorder %s27, 1
      %p202 = por %p200, %p201
      %p204 = scmp.ne.s32.totalorder %s189, %s203
      %p205 = scmp.eq.s32.totalorder %s27, 0
      %p206 = por %p204, %p205
      %s208 = sadd.s32 %s207, 1
      %p211 = scmp.eq.s32.totalorder %s21, 1
      %p212 = scmp.ne.s32.totalorder %s207, %s209
      %p213 = scmp.eq.s32.totalorder %s21, 0
      %p214 = por %p212, %p213
      %p215 = scmp.ne.s32.totalorder %s207, %s209
      %p216 = scmp.eq.s32.totalorder %s26, 1
      %p217 = por %p215, %p216
      %p218 = scmp.ne.s32.totalorder %s209, %s210
      %p219 = scmp.eq.s32.totalorder %s26, 0
      %p220 = por %p218, %p219
      %p221 = scmp.ne.s32.totalorder %s209, %s210
      %p222 = scmp.eq.s32.totalorder %s27, 1
      %p223 = por %p221, %p222
      %p225 = scmp.ne.s32.totalorder %s210, %s224
      %p226 = scmp.eq.s32.totalorder %s27, 0
      %p227 = por %p225, %p226
      %s228 = ssub.s32 %s21, %s28
      %p229 = scmp.eq.s32.totalorder %s228, 0
      %s231 = sadd.s32 %s230, 1
      %s232 = scalar_select %p229, %s230, %s231
      %p235 = pneg %p229
      %p236 = scmp.eq.s32.totalorder %s21, 1
      %p237 = por %p235, %p236
      %p238 = scmp.ne.s32.totalorder %s230, %s233
      %p239 = scmp.eq.s32.totalorder %s21, 0
      %p240 = por %p238, %p239
      %p241 = scmp.ne.s32.totalorder %s230, %s233
      %p242 = scmp.eq.s32.totalorder %s26, 1
      %p243 = por %p241, %p242
      %p244 = scmp.ne.s32.totalorder %s233, %s234
      %p245 = scmp.eq.s32.totalorder %s26, 0
      %p246 = por %p244, %p245
      %p247 = scmp.ne.s32.totalorder %s233, %s234
      %p248 = scmp.eq.s32.totalorder %s27, 1
      %p249 = por %p247, %p248
      %p251 = scmp.ne.s32.totalorder %s234, %s250
      %p252 = scmp.eq.s32.totalorder %s27, 0
      %p253 = por %p251, %p252
      %p254 = scmp.le.s32.totalorder 1, %s21
      %p255 = scmp.lt.s32.totalorder %s21, 3
      %p256 = pnand %p254, %p255
      %p257 = pneg %p256
      // Predicated region
      $region9: #{encoder_wrapper_forward.1} parent=5 // pred_check
        _
      $region10: #{encoder_wrapper_forward.1} parent=5 // pred_check_branch
        %259 = sbr.rel (%p256) target = $region12
      $region11: #{encoder_wrapper_forward.1} parent=5 // pred_region
        %s260 = ssub.s32 %s21, 1
        // Predicated region
        $region13: #{encoder_wrapper_forward.1} parent=11 // pred_check
          %p261 = pneg %p94
        $region14: #{encoder_wrapper_forward.1} parent=11 // pred_check_branch
          %263 = sbr.rel (%p261) target = $region16
        $region15: #{encoder_wrapper_forward.1} parent=11 // pred_region
          %s265 = ssub.s32 256, 256
          %266 = vsyncadd [#allocation3], %s265
          %s267 = sshll.u32 [#allocation2], 4
          %s268 = int_to_ptr.vmem [resolvable:$true] %s267
          %273 = dma.hbm_to_vmem [thread:$0]  %s2, 256, %s268, [#allocation3], 128, 128, 8
        $region16: #{encoder_wrapper_forward.1} parent=11 // pred_fallthru
          _
        // Predicated region
        $region17: #{encoder_wrapper_forward.1} parent=11 // pred_check
          %p274 = pneg %p115
        $region18: #{encoder_wrapper_forward.1} parent=11 // pred_check_branch
          %276 = sbr.rel (%p274) target = $region20
        $region19: #{encoder_wrapper_forward.1} parent=11 // pred_region
          %s278 = ssub.s32 256, 256
          %279 = vsyncadd [#allocation6], %s278
          %s280 = sshll.u32 [#allocation5], 4
          %s281 = int_to_ptr.vmem [resolvable:$true] %s280
          %286 = dma.hbm_to_vmem [thread:$0]  %s3, 256, %s281, [#allocation6], 64, 64, 4
        $region20: #{encoder_wrapper_forward.1} parent=11 // pred_fallthru
          _
        // Predicated region
        $region21: #{encoder_wrapper_forward.1} parent=11 // pred_check
          %p287 = pneg %p136
        $region22: #{encoder_wrapper_forward.1} parent=11 // pred_check_branch
          %289 = sbr.rel (%p287) target = $region24
        $region23: #{encoder_wrapper_forward.1} parent=11 // pred_region
          _
        $region24: #{encoder_wrapper_forward.1} parent=11 // pred_fallthru
          _
        // Predicated region
        $region25: #{encoder_wrapper_forward.1} parent=11 // pred_check
          %p290 = pneg %p157
        $region26: #{encoder_wrapper_forward.1} parent=11 // pred_check_branch
          %292 = sbr.rel (%p290) target = $region28
        $region27: #{encoder_wrapper_forward.1} parent=11 // pred_region
          _
        $region28: #{encoder_wrapper_forward.1} parent=11 // pred_fallthru
          _
        // Predicated region
        $region29: #{encoder_wrapper_forward.1} parent=11 // pred_check
          %p293 = pneg %p178
        $region30: #{encoder_wrapper_forward.1} parent=11 // pred_check_branch
          %295 = sbr.rel (%p293) target = $region32
        $region31: #{encoder_wrapper_forward.1} parent=11 // pred_region
          %s297 = ssub.s32 512, 512
          %298 = vsyncadd [#allocation6], %s297
          %s299 = sshll.u32 [#allocation7], 4
          %s300 = int_to_ptr.vmem [resolvable:$true] %s299
          %305 = dma.hbm_to_vmem [thread:$0]  %s6, 512, %s300, [#allocation6], 64, 64, 4
        $region32: #{encoder_wrapper_forward.1} parent=11 // pred_fallthru
          _
        // Predicated region
        $region33: #{encoder_wrapper_forward.1} parent=11 // pred_check
          %p306 = pneg %p199
        $region34: #{encoder_wrapper_forward.1} parent=11 // pred_check_branch
          %308 = sbr.rel (%p306) target = $region36
        $region35: #{encoder_wrapper_forward.1} parent=11 // pred_region
          _
        $region36: #{encoder_wrapper_forward.1} parent=11 // pred_fallthru
          _
        // Predicated region
        $region37: #{encoder_wrapper_forward.1} parent=11 // pred_check
          %p309 = pneg %p220
        $region38: #{encoder_wrapper_forward.1} parent=11 // pred_check_branch
          %311 = sbr.rel (%p309) target = $region40
        $region39: #{encoder_wrapper_forward.1} parent=11 // pred_region
          %s313 = ssub.s32 256, 256
          %314 = vsyncadd [#allocation9], %s313
          %s315 = sshll.u32 [#allocation8], 4
          %s316 = int_to_ptr.vmem [resolvable:$true] %s315
          %321 = dma.hbm_to_vmem [thread:$0]  %s8, 256, %s316, [#allocation9], 128, 128, 8
        $region40: #{encoder_wrapper_forward.1} parent=11 // pred_fallthru
          _
      $region12: #{encoder_wrapper_forward.1} parent=5 // pred_fallthru
        _
      %p322 = scmp.lt.s32.totalorder %s21, 2
      // Predicated region
      $region41: #{encoder_wrapper_forward.1} parent=5 // pred_check
        %p323 = pneg %p322
      $region42: #{encoder_wrapper_forward.1} parent=5 // pred_check_branch
        %325 = sbr.rel (%p323) target = $region44
      $region43: #{encoder_wrapper_forward.1} parent=5 // pred_region
        // Predicated region
        $region45: #{encoder_wrapper_forward.1} parent=43 // pred_check
          %p326 = pneg %p41
        $region46: #{encoder_wrapper_forward.1} parent=43 // pred_check_branch
          %328 = sbr.rel (%p326) target = $region48
        $region47: #{encoder_wrapper_forward.1} parent=43 // pred_region
          %p329 = scmp.lt.s32.totalorder %s21, 1
          %s330 = scalar_select %p329, %s21, 1
          %s331 = smul.addr %s330, 2
          %s332 = smul.addr %s331, 8
          %s333 = scalar_lea.vmem %s0, %s332
        $region48: #{encoder_wrapper_forward.1} parent=43 // pred_fallthru
          _
        // Predicated region
        $region49: #{encoder_wrapper_forward.1} parent=43 // pred_check
          %p334 = pneg %p67
        $region50: #{encoder_wrapper_forward.1} parent=43 // pred_check_branch
          %336 = sbr.rel (%p334) target = $region52
        $region51: #{encoder_wrapper_forward.1} parent=43 // pred_region
          %p337 = scmp.lt.s32.totalorder %s21, 1
          %s338 = scalar_select %p337, %s21, 1
          %s339 = scalar_lea.vmem %s1, %s338
        $region52: #{encoder_wrapper_forward.1} parent=43 // pred_fallthru
          _
      $region44: #{encoder_wrapper_forward.1} parent=5 // pred_fallthru
        _
      %p340 = scmp.le.s32.totalorder 1, %s21
      %p341 = scmp.lt.s32.totalorder %s21, 3
      %p342 = pnand %p340, %p341
      %p343 = pneg %p342
      // Predicated region
      $region53: #{encoder_wrapper_forward.1} parent=5 // pred_check
        _
      $region54: #{encoder_wrapper_forward.1} parent=5 // pred_check_branch
        %345 = sbr.rel (%p342) target = $region56
      $region55: #{encoder_wrapper_forward.1} parent=5 // pred_region
        %s346 = ssub.s32 %s21, 1
        // Predicated region
        $region57: #{encoder_wrapper_forward.1} parent=55 // pred_check
          %p347 = pneg %p94
        $region58: #{encoder_wrapper_forward.1} parent=55 // pred_check_branch
          %349 = sbr.rel (%p347) target = $region60
        $region59: #{encoder_wrapper_forward.1} parent=55 // pred_region
          %350 = dma.done [#allocation3], 256
        $region60: #{encoder_wrapper_forward.1} parent=55 // pred_fallthru
          _
        // Predicated region
        $region61: #{encoder_wrapper_forward.1} parent=55 // pred_check
          %p351 = pneg %p115
        $region62: #{encoder_wrapper_forward.1} parent=55 // pred_check_branch
          %353 = sbr.rel (%p351) target = $region64
        $region63: #{encoder_wrapper_forward.1} parent=55 // pred_region
          %354 = dma.done [#allocation6], 256
        $region64: #{encoder_wrapper_forward.1} parent=55 // pred_fallthru
          _
        // Predicated region
        $region65: #{encoder_wrapper_forward.1} parent=55 // pred_check
          %p355 = pneg %p178
        $region66: #{encoder_wrapper_forward.1} parent=55 // pred_check_branch
          %357 = sbr.rel (%p355) target = $region68
        $region67: #{encoder_wrapper_forward.1} parent=55 // pred_region
          %358 = dma.done [#allocation6], 512
        $region68: #{encoder_wrapper_forward.1} parent=55 // pred_fallthru
          _
        // Predicated region
        $region69: #{encoder_wrapper_forward.1} parent=55 // pred_check
          %p359 = pneg %p220
        $region70: #{encoder_wrapper_forward.1} parent=55 // pred_check_branch
          %361 = sbr.rel (%p359) target = $region72
        $region71: #{encoder_wrapper_forward.1} parent=55 // pred_region
          %362 = dma.done [#allocation9], 256
        $region72: #{encoder_wrapper_forward.1} parent=55 // pred_fallthru
          _
        %p363 = scmp.lt.s32.totalorder %s26, 1
        %s364 = scalar_select %p363, %s26, 1
        %s365 = smul.addr %s364, 2
        %s366 = smul.addr %s365, 8
        %s367 = scalar_lea.vmem %s0, %s366
        %p368 = pneg %p47
        %p369 = pneg %p44
        %p370 = scmp.lt.s32.totalorder %s26, 1
        %s371 = scalar_select %p370, %s26, 1
        %s372 = scalar_lea.vmem %s1, %s371
        %p373 = pneg %p73
        %p374 = pneg %p70
        %p375 = pneg %p94
        %p376 = pneg %p91
        %p377 = pneg %p115
        %p378 = pneg %p112
        %p379 = pneg %p136
        %p380 = pneg %p133
        %p381 = pneg %p157
        %p382 = pneg %p154
        %p383 = pneg %p178
        %p384 = pneg %p175
        %p385 = pneg %p199
        %p386 = pneg %p196
        %p387 = pneg %p220
        %p388 = pneg %p217
        %p389 = pneg %p246
        %p390 = pneg %p243
        %s391 = sand.u32 %s233, 1
        %s392 = scalar_lea.sflag [#allocation4], %s391
        %s393 = sand.u32 %s233, 1
        %s394 = smul.addr %s393, 16
        %s395 = scalar_lea.vmem [#allocation10], %s394
        %p396 = scmp.lt.s32.totalorder %s26, 1
        %s397 = scalar_select %p396, %s26, 1
        %s398 = smul.addr %s397, 2
        %s399 = smul.addr %s398, 8
        %s400 = scalar_lea.vmem %s0, %s399
        %p401 = scmp.lt.s32.totalorder %s26, 1
        %s402 = scalar_select %p401, %s26, 1
        %s403 = scalar_lea.vmem %s1, %s402
        %v405 = vld [vmem:[%s400] sm:$0xff]
        %v406 = vld [vmem:[%s400 + $0x8] sm:$0xff]
        %v407 = vld [vmem:[%s403] sm:$0x1]
        %v408 = vpack.c.bf16 %v406, %v405
        %v409 = vld [vmem:[#allocation5] sm:$0xf]
        %v410 = vld [vmem:[#allocation5 + $0x4] sm:$0xf]
        %v411 = vld [vmem:[#allocation5 + $0x8] sm:$0xf]
        %v412 = vld [vmem:[#allocation5 + $0xc] sm:$0xf]
        %v413 = vld [vmem:[#allocation2] sm:$0xff]
        %v414 = vld [vmem:[#allocation2 + $0x8] sm:$0xff]
        %v419 = vunpack.c.l.b16 %v409
        %v420 = vunpack.c.l.b16 %v410
        %v421 = vunpack.c.l.b16 %v411
        %v422 = vunpack.c.l.b16 %v412
        %v423 = vpack.c.b16 %v420, %v419
        %v424 = vpack.c.b16 %v422, %v421
        %vm427 = vcmask 261120
        %v429 = vsel %vm427, %v408, 0
        %431 = vmatprep.subr.bf16.mxu0 0
        %432 = vmatpush1.bf16.msra.mxu0 0
        %433 = vmatprep.subr.bf16.mxu0 0
        %434 = vmatpush1.bf16.msra.mxu0 0
        %435 = vmatprep.subr.bf16.mxu0 0
        %436 = vmatpush1.bf16.msra.mxu0 0
        %437 = vmatprep.subr.bf16.mxu0 0
        %438 = vmatpush1.bf16.msra.mxu0 0
        %439 = vmatprep.subr.bf16.mxu0 0
        %440 = vmatpush1.bf16.msra.mxu0 0
        %441 = vmatprep.subr.bf16.mxu0 0
        %442 = vmatpush1.bf16.msra.mxu0 0
        %443 = vmatprep.subr.bf16.mxu0 0
        %444 = vmatpush1.bf16.msra.mxu0 %v424
        %445 = vmatprep.subr.bf16.mxu0 0
        %446 = vmatpush1.bf16.msra.mxu0 %v423
        %447 = vmatprep.subr.bf16.mxu0 0
        %448 = vmatpush2.bf16.msra.mxu0 0
        %449 = vmatprep.subr.bf16.mxu0 0
        %450 = vmatpush2.bf16.msra.mxu0 0
        %451 = vmatprep.subr.bf16.mxu0 0
        %452 = vmatpush2.bf16.msra.mxu0 0
        %453 = vmatprep.subr.bf16.mxu0 0
        %454 = vmatpush2.bf16.msra.mxu0 0
        %455 = vmatprep.subr.bf16.mxu0 0
        %456 = vmatpush2.bf16.msra.mxu0 0
        %457 = vmatprep.subr.bf16.mxu0 0
        %458 = vmatpush2.bf16.msra.mxu0 0
        %459 = vmatprep.subr.bf16.mxu0 0
        %460 = vmatpush2.bf16.msra.mxu0 0
        %461 = vmatprep.subr.bf16.mxu0 0
        %462 = vmatpush2.bf16.msra.mxu0 0
        %463 = vmatprep.mubr.bf16.mxu0 0
        %464 = vmatmul.mubr.bf16.gmra.mxu0 %v429
        %v465 = vpop.f32.mrf.mxu0
        %v466 = vadd.f32 %v413, %v465
        %v467 = vpop.f32.mrf.mxu0
        %v468 = vpop.f32.mrf.mxu0
        %v469 = vadd.f32 %v414, %v468
        %v470 = vpop.f32.mrf.mxu0
        %471 = vdwg.mxu0
        %v472 = vld [vmem:[%s4] sm:$0xf]
        %v473 = vld [vmem:[%s4 + $0x4] sm:$0xf]
        %v474 = vld [vmem:[%s4 + $0x8] sm:$0xf]
        %v475 = vld [vmem:[%s4 + $0xc] sm:$0xf]
        %v476 = vld [vmem:[%s5] sm:$0xf]
        %v477 = vld [vmem:[%s5 + $0x4] sm:$0xf]
        %v478 = vld [vmem:[%s5 + $0x8] sm:$0xf]
        %v479 = vld [vmem:[%s5 + $0xc] sm:$0xf]
        %v480 = vld [vmem:[#allocation7] sm:$0xf]
        %v481 = vld [vmem:[#allocation7 + $0x4] sm:$0xf]
        %v482 = vld [vmem:[#allocation7 + $0x8] sm:$0xf]
        %v483 = vld [vmem:[#allocation7 + $0xc] sm:$0xf]
        %v484 = vld [vmem:[%s7] sm:$0xf]
        %v485 = vld [vmem:[%s7 + $0x4] sm:$0xf]
        %v486 = vld [vmem:[%s7 + $0x8] sm:$0xf]
        %v487 = vld [vmem:[%s7 + $0xc] sm:$0xf]
        %v488 = vld [vmem:[%s7 + $0x10] sm:$0xf]
        %v489 = vld [vmem:[%s7 + $0x14] sm:$0xf]
        %v490 = vld [vmem:[%s7 + $0x18] sm:$0xf]
        %v491 = vld [vmem:[%s7 + $0x1c] sm:$0xf]
        %v492 = vld [vmem:[#allocation8] sm:$0xff]
        %v493 = vpack.c.bf16 %v469, %v466
        %v494 = vlaneseq
        %v495 = vshrl.u32 %v494, 7
        %v496 = vsub.s32 0, %v495
        %v497 = vrot.slane %v492, %v496
        %v502 = vunpack.c.l.b16 %v472
        %v503 = vunpack.c.l.b16 %v473
        %v504 = vunpack.c.l.b16 %v474
        %v505 = vunpack.c.l.b16 %v475
        %v506 = vpack.c.b16 %v503, %v502
        %v507 = vpack.c.b16 %v505, %v504
        %v511 = vsel %vm427, %v493, 0
        %513 = vmatprep.subr.bf16.mxu0 0
        %514 = vmatpush1.bf16.msra.mxu0 0
        %515 = vmatprep.subr.bf16.mxu0 0
        %516 = vmatpush1.bf16.msra.mxu0 0
        %517 = vmatprep.subr.bf16.mxu0 0
        %518 = vmatpush1.bf16.msra.mxu0 0
        %519 = vmatprep.subr.bf16.mxu0 0
        %520 = vmatpush1.bf16.msra.mxu0 0
        %521 = vmatprep.subr.bf16.mxu0 0
        %522 = vmatpush1.bf16.msra.mxu0 0
        %523 = vmatprep.subr.bf16.mxu0 0
        %524 = vmatpush1.bf16.msra.mxu0 0
        %525 = vmatprep.subr.bf16.mxu0 0
        %526 = vmatpush1.bf16.msra.mxu0 %v507
        %527 = vmatprep.subr.bf16.mxu0 0
        %528 = vmatpush1.bf16.msra.mxu0 %v506
        %529 = vmatprep.subr.bf16.mxu0 0
        %530 = vmatpush2.bf16.msra.mxu0 0
        %531 = vmatprep.subr.bf16.mxu0 0
        %532 = vmatpush2.bf16.msra.mxu0 0
        %533 = vmatprep.subr.bf16.mxu0 0
        %534 = vmatpush2.bf16.msra.mxu0 0
        %535 = vmatprep.subr.bf16.mxu0 0
        %536 = vmatpush2.bf16.msra.mxu0 0
        %537 = vmatprep.subr.bf16.mxu0 0
        %538 = vmatpush2.bf16.msra.mxu0 0
        %539 = vmatprep.subr.bf16.mxu0 0
        %540 = vmatpush2.bf16.msra.mxu0 0
        %541 = vmatprep.subr.bf16.mxu0 0
        %542 = vmatpush2.bf16.msra.mxu0 0
        %543 = vmatprep.subr.bf16.mxu0 0
        %544 = vmatpush2.bf16.msra.mxu0 0
        %545 = vmatprep.mubr.bf16.mxu0 0
        %546 = vmatmul.mubr.bf16.gmra.mxu0 %v511
        %v547 = vpop.f32.mrf.mxu0
        %v548 = vadd.f32 %v497, %v547
        %v549 = vpop.f32.mrf.mxu0
        %v550 = vpop.f32.mrf.mxu0
        %v551 = vadd.f32 %v497, %v550
        %v552 = vpop.f32.mrf.mxu0
        %553 = vdwg.mxu0
        %556 = vrot.lane.b32.xlu0 %v548, 120
        %v557 = vpop.permute.xlu0 %556
        %558 = vrot.lane.b32.xlu0 %v551, 120
        %v559 = vpop.permute.xlu0 %558
        %562 = vrot.lane.b32.xlu0 %v548, 112
        %v563 = vpop.permute.xlu0 %562
        %564 = vrot.lane.b32.xlu0 %v551, 112
        %v565 = vpop.permute.xlu0 %564
        %568 = vrot.lane.b32.xlu0 %v548, 104
        %v569 = vpop.permute.xlu0 %568
        %570 = vrot.lane.b32.xlu0 %v551, 104
        %v571 = vpop.permute.xlu0 %570
        %v574 = vpack.c.bf16 %v551, %v548
        %v575 = vpack.c.bf16 %v559, %v557
        %v576 = vpack.c.bf16 %v565, %v563
        %v577 = vpack.c.bf16 %v571, %v569
        %579 = vrot.lane.b32.xlu0 %v574, 96
        %v580 = vpop.permute.xlu0 %579
        %vm581 = vcmask 64512
        %v583 = vsel %vm581, %v574, 0
        %v586 = vsel %vm581, %v580, 0
        %588 = vmatprep.subr.bf16.mxu0 0
        %589 = vmatpush1.bf16.xpose.msra.mxu0 0
        %590 = vmatprep.subr.bf16.mxu0 0
        %591 = vmatpush1.bf16.xpose.msra.mxu0 0
        %592 = vmatprep.subr.bf16.mxu0 0
        %593 = vmatpush1.bf16.xpose.msra.mxu0 0
        %594 = vmatprep.subr.bf16.mxu0 0
        %595 = vmatpush1.bf16.xpose.msra.mxu0 0
        %596 = vmatprep.subr.bf16.mxu0 0
        %597 = vmatpush1.bf16.xpose.msra.mxu0 0
        %598 = vmatprep.subr.bf16.mxu0 0
        %599 = vmatpush1.bf16.xpose.msra.mxu0 0
        %600 = vmatprep.subr.bf16.mxu0 0
        %601 = vmatpush1.bf16.xpose.msra.mxu0 0
        %602 = vmatprep.subr.bf16.mxu0 0
        %603 = vmatpush1.bf16.xpose.msra.mxu0 %v586
        %604 = vmatprep.subr.bf16.mxu0 0
        %605 = vmatpush2.bf16.xpose.msra.mxu0 0
        %606 = vmatprep.subr.bf16.mxu0 0
        %607 = vmatpush2.bf16.xpose.msra.mxu0 0
        %608 = vmatprep.subr.bf16.mxu0 0
        %609 = vmatpush2.bf16.xpose.msra.mxu0 0
        %610 = vmatprep.subr.bf16.mxu0 0
        %611 = vmatpush2.bf16.xpose.msra.mxu0 0
        %612 = vmatprep.subr.bf16.mxu0 0
        %613 = vmatpush2.bf16.xpose.msra.mxu0 0
        %614 = vmatprep.subr.bf16.mxu0 0
        %615 = vmatpush2.bf16.xpose.msra.mxu0 0
        %616 = vmatprep.subr.bf16.mxu0 0
        %617 = vmatpush2.bf16.xpose.msra.mxu0 0
        %618 = vmatprep.subr.bf16.mxu0 0
        %619 = vmatpush2.bf16.xpose.msra.mxu0 0
        %620 = vmatprep.mubr.bf16.mxu0 0
        %621 = vmatmul.mubr.bf16.gmra.mxu0 %v583
        %v622 = vpop.f32.mrf.mxu0
        %v623 = vadd.f32 0.0, %v622
        %v624 = vpop.f32.mrf.mxu0
        %v625 = vpop.f32.mrf.mxu0
        %v626 = vadd.f32 0.0, %v625
        %v627 = vpop.f32.mrf.mxu0
        %628 = vdwg.mxu0
        %630 = vrot.lane.b32.xlu0 %v575, 96
        %v631 = vpop.permute.xlu0 %630
        %v633 = vsel %vm581, %v575, 0
        %v636 = vsel %vm581, %v631, 0
        %638 = vmatprep.subr.bf16.mxu0 0
        %639 = vmatpush1.bf16.xpose.msra.mxu0 0
        %640 = vmatprep.subr.bf16.mxu0 0
        %641 = vmatpush1.bf16.xpose.msra.mxu0 0
        %642 = vmatprep.subr.bf16.mxu0 0
        %643 = vmatpush1.bf16.xpose.msra.mxu0 0
        %644 = vmatprep.subr.bf16.mxu0 0
        %645 = vmatpush1.bf16.xpose.msra.mxu0 0
        %646 = vmatprep.subr.bf16.mxu0 0
        %647 = vmatpush1.bf16.xpose.msra.mxu0 0
        %648 = vmatprep.subr.bf16.mxu0 0
        %649 = vmatpush1.bf16.xpose.msra.mxu0 0
        %650 = vmatprep.subr.bf16.mxu0 0
        %651 = vmatpush1.bf16.xpose.msra.mxu0 0
        %652 = vmatprep.subr.bf16.mxu0 0
        %653 = vmatpush1.bf16.xpose.msra.mxu0 %v636
        %654 = vmatprep.subr.bf16.mxu0 0
        %655 = vmatpush2.bf16.xpose.msra.mxu0 0
        %656 = vmatprep.subr.bf16.mxu0 0
        %657 = vmatpush2.bf16.xpose.msra.mxu0 0
        %658 = vmatprep.subr.bf16.mxu0 0
        %659 = vmatpush2.bf16.xpose.msra.mxu0 0
        %660 = vmatprep.subr.bf16.mxu0 0
        %661 = vmatpush2.bf16.xpose.msra.mxu0 0
        %662 = vmatprep.subr.bf16.mxu0 0
        %663 = vmatpush2.bf16.xpose.msra.mxu0 0
        %664 = vmatprep.subr.bf16.mxu0 0
        %665 = vmatpush2.bf16.xpose.msra.mxu0 0
        %666 = vmatprep.subr.bf16.mxu0 0
        %667 = vmatpush2.bf16.xpose.msra.mxu0 0
        %668 = vmatprep.subr.bf16.mxu0 0
        %669 = vmatpush2.bf16.xpose.msra.mxu0 0
        %670 = vmatprep.mubr.bf16.mxu0 0
        %671 = vmatmul.mubr.bf16.gmra.mxu0 %v633
        %v672 = vpop.f32.mrf.mxu0
        %v673 = vadd.f32 0.0, %v672
        %v674 = vpop.f32.mrf.mxu0
        %v675 = vpop.f32.mrf.mxu0
        %v676 = vadd.f32 0.0, %v675
        %v677 = vpop.f32.mrf.mxu0
        %678 = vdwg.mxu0
        %680 = vrot.lane.b32.xlu0 %v576, 96
        %v681 = vpop.permute.xlu0 %680
        %v683 = vsel %vm581, %v576, 0
        %v686 = vsel %vm581, %v681, 0
        %688 = vmatprep.subr.bf16.mxu0 0
        %689 = vmatpush1.bf16.xpose.msra.mxu0 0
        %690 = vmatprep.subr.bf16.mxu0 0
        %691 = vmatpush1.bf16.xpose.msra.mxu0 0
        %692 = vmatprep.subr.bf16.mxu0 0
        %693 = vmatpush1.bf16.xpose.msra.mxu0 0
        %694 = vmatprep.subr.bf16.mxu0 0
        %695 = vmatpush1.bf16.xpose.msra.mxu0 0
        %696 = vmatprep.subr.bf16.mxu0 0
        %697 = vmatpush1.bf16.xpose.msra.mxu0 0
        %698 = vmatprep.subr.bf16.mxu0 0
        %699 = vmatpush1.bf16.xpose.msra.mxu0 0
        %700 = vmatprep.subr.bf16.mxu0 0
        %701 = vmatpush1.bf16.xpose.msra.mxu0 0
        %702 = vmatprep.subr.bf16.mxu0 0
        %703 = vmatpush1.bf16.xpose.msra.mxu0 %v686
        %704 = vmatprep.subr.bf16.mxu0 0
        %705 = vmatpush2.bf16.xpose.msra.mxu0 0
        %706 = vmatprep.subr.bf16.mxu0 0
        %707 = vmatpush2.bf16.xpose.msra.mxu0 0
        %708 = vmatprep.subr.bf16.mxu0 0
        %709 = vmatpush2.bf16.xpose.msra.mxu0 0
        %710 = vmatprep.subr.bf16.mxu0 0
        %711 = vmatpush2.bf16.xpose.msra.mxu0 0
        %712 = vmatprep.subr.bf16.mxu0 0
        %713 = vmatpush2.bf16.xpose.msra.mxu0 0
        %714 = vmatprep.subr.bf16.mxu0 0
        %715 = vmatpush2.bf16.xpose.msra.mxu0 0
        %716 = vmatprep.subr.bf16.mxu0 0
        %717 = vmatpush2.bf16.xpose.msra.mxu0 0
        %718 = vmatprep.subr.bf16.mxu0 0
        %719 = vmatpush2.bf16.xpose.msra.mxu0 0
        %720 = vmatprep.mubr.bf16.mxu0 0
        %721 = vmatmul.mubr.bf16.gmra.mxu0 %v683
        %v722 = vpop.f32.mrf.mxu0
        %v723 = vadd.f32 0.0, %v722
        %v724 = vpop.f32.mrf.mxu0
        %v725 = vpop.f32.mrf.mxu0
        %v726 = vadd.f32 0.0, %v725
        %v727 = vpop.f32.mrf.mxu0
        %728 = vdwg.mxu0
        %730 = vrot.lane.b32.xlu0 %v577, 96
        %v731 = vpop.permute.xlu0 %730
        %v733 = vsel %vm581, %v577, 0
        %v736 = vsel %vm581, %v731, 0
        %738 = vmatprep.subr.bf16.mxu0 0
        %739 = vmatpush1.bf16.xpose.msra.mxu0 0
        %740 = vmatprep.subr.bf16.mxu0 0
        %741 = vmatpush1.bf16.xpose.msra.mxu0 0
        %742 = vmatprep.subr.bf16.mxu0 0
        %743 = vmatpush1.bf16.xpose.msra.mxu0 0
        %744 = vmatprep.subr.bf16.mxu0 0
        %745 = vmatpush1.bf16.xpose.msra.mxu0 0
        %746 = vmatprep.subr.bf16.mxu0 0
        %747 = vmatpush1.bf16.xpose.msra.mxu0 0
        %748 = vmatprep.subr.bf16.mxu0 0
        %749 = vmatpush1.bf16.xpose.msra.mxu0 0
        %750 = vmatprep.subr.bf16.mxu0 0
        %751 = vmatpush1.bf16.xpose.msra.mxu0 0
        %752 = vmatprep.subr.bf16.mxu0 0
        %753 = vmatpush1.bf16.xpose.msra.mxu0 %v736
        %754 = vmatprep.subr.bf16.mxu0 0
        %755 = vmatpush2.bf16.xpose.msra.mxu0 0
        %756 = vmatprep.subr.bf16.mxu0 0
        %757 = vmatpush2.bf16.xpose.msra.mxu0 0
        %758 = vmatprep.subr.bf16.mxu0 0
        %759 = vmatpush2.bf16.xpose.msra.mxu0 0
        %760 = vmatprep.subr.bf16.mxu0 0
        %761 = vmatpush2.bf16.xpose.msra.mxu0 0
        %762 = vmatprep.subr.bf16.mxu0 0
        %763 = vmatpush2.bf16.xpose.msra.mxu0 0
        %764 = vmatprep.subr.bf16.mxu0 0
        %765 = vmatpush2.bf16.xpose.msra.mxu0 0
        %766 = vmatprep.subr.bf16.mxu0 0
        %767 = vmatpush2.bf16.xpose.msra.mxu0 0
        %768 = vmatprep.subr.bf16.mxu0 0
        %769 = vmatpush2.bf16.xpose.msra.mxu0 0
        %770 = vmatprep.mubr.bf16.mxu0 0
        %771 = vmatmul.mubr.bf16.gmra.mxu0 %v733
        %v772 = vpop.f32.mrf.mxu0
        %v773 = vadd.f32 0.0, %v772
        %v774 = vpop.f32.mrf.mxu0
        %v775 = vpop.f32.mrf.mxu0
        %v776 = vadd.f32 0.0, %v775
        %v777 = vpop.f32.mrf.mxu0
        %778 = vdwg.mxu0
        %v779 = vmul.f32 %v623, 0.35355338
        %v780 = vmul.f32 %v626, 0.35355338
        %v781 = vmul.f32 %v673, 0.35355338
        %v782 = vmul.f32 %v676, 0.35355338
        %v783 = vmul.f32 %v723, 0.35355338
        %v784 = vmul.f32 %v726, 0.35355338
        %v785 = vmul.f32 %v773, 0.35355338
        %v786 = vmul.f32 %v776, 0.35355338
        %v788 = vlaneseq
        %v789 = vshrl.u32 %v788, 7
        %v790 = vsub.s32 0, %v789
        %v791 = vrot.slane %v407, %v790
        %v793 = vadd.f32 %v779, %v791
        %v794 = vadd.f32 %v780, %v791
        %v795 = vadd.f32 %v781, %v791
        %v796 = vadd.f32 %v782, %v791
        %v797 = vadd.f32 %v783, %v791
        %v798 = vadd.f32 %v784, %v791
        %v799 = vadd.f32 %v785, %v791
        %v800 = vadd.f32 %v786, %v791
        %vm801 = vcmask 130048
        %v802 = vsel %vm801, %v793, -inf
        %803 = vmax.xlane.f32.xlu0 %v802
        %v804 = vpop.xlane.xlu0 %803
        %v805 = vsel %vm801, %v794, -inf
        %806 = vmax.xlane.f32.xlu0 %v805
        %v807 = vpop.xlane.xlu0 %806
        %v808 = vsel %vm801, %v795, -inf
        %809 = vmax.xlane.f32.xlu0 %v808
        %v810 = vpop.xlane.xlu0 %809
        %v811 = vsel %vm801, %v796, -inf
        %812 = vmax.xlane.f32.xlu0 %v811
        %v813 = vpop.xlane.xlu0 %812
        %v814 = vsel %vm801, %v797, -inf
        %815 = vmax.xlane.f32.xlu0 %v814
        %v816 = vpop.xlane.xlu0 %815
        %v817 = vsel %vm801, %v798, -inf
        %818 = vmax.xlane.f32.xlu0 %v817
        %v819 = vpop.xlane.xlu0 %818
        %v820 = vsel %vm801, %v799, -inf
        %821 = vmax.xlane.f32.xlu0 %v820
        %v822 = vpop.xlane.xlu0 %821
        %v823 = vsel %vm801, %v800, -inf
        %824 = vmax.xlane.f32.xlu0 %v823
        %v825 = vpop.xlane.xlu0 %824
        %v826 = vsub.f32 %v793, %v804
        %v827 = vsub.f32 %v794, %v807
        %v828 = vsub.f32 %v795, %v810
        %v829 = vsub.f32 %v796, %v813
        %v830 = vsub.f32 %v797, %v816
        %v831 = vsub.f32 %v798, %v819
        %v832 = vsub.f32 %v799, %v822
        %v833 = vsub.f32 %v800, %v825
        %v834 = vmul.f32 %v826, 1.442695
        %v835 = vpow.pop %v834
        %v836 = vmul.f32 %v827, 1.442695
        %v837 = vpow.pop %v836
        %v838 = vmul.f32 %v828, 1.442695
        %v839 = vpow.pop %v838
        %v840 = vmul.f32 %v829, 1.442695
        %v841 = vpow.pop %v840
        %v842 = vmul.f32 %v830, 1.442695
        %v843 = vpow.pop %v842
        %v844 = vmul.f32 %v831, 1.442695
        %v845 = vpow.pop %v844
        %v846 = vmul.f32 %v832, 1.442695
        %v847 = vpow.pop %v846
        %v848 = vmul.f32 %v833, 1.442695
        %v849 = vpow.pop %v848
        %v850 = vsel %vm801, %v835, 0.0
        %851 = vadd.xlane.f32.xlu0 %v850
        %v852 = vpop.xlane.xlu0 %851
        %v853 = vsel %vm801, %v837, 0.0
        %854 = vadd.xlane.f32.xlu0 %v853
        %v855 = vpop.xlane.xlu0 %854
        %v856 = vsel %vm801, %v839, 0.0
        %857 = vadd.xlane.f32.xlu0 %v856
        %v858 = vpop.xlane.xlu0 %857
        %v859 = vsel %vm801, %v841, 0.0
        %860 = vadd.xlane.f32.xlu0 %v859
        %v861 = vpop.xlane.xlu0 %860
        %v862 = vsel %vm801, %v843, 0.0
        %863 = vadd.xlane.f32.xlu0 %v862
        %v864 = vpop.xlane.xlu0 %863
        %v865 = vsel %vm801, %v845, 0.0
        %866 = vadd.xlane.f32.xlu0 %v865
        %v867 = vpop.xlane.xlu0 %866
        %v868 = vsel %vm801, %v847, 0.0
        %869 = vadd.xlane.f32.xlu0 %v868
        %v870 = vpop.xlane.xlu0 %869
        %v871 = vsel %vm801, %v849, 0.0
        %872 = vadd.xlane.f32.xlu0 %v871
        %v873 = vpop.xlane.xlu0 %872
        %v874 = vrcp.pop %v852
        %v875 = vrcp.pop %v855
        %v876 = vrcp.pop %v858
        %v877 = vrcp.pop %v861
        %v878 = vrcp.pop %v864
        %v879 = vrcp.pop %v867
        %v880 = vrcp.pop %v870
        %v881 = vrcp.pop %v873
        %v882 = vmul.f32 %v835, %v874
        %v883 = vmul.f32 %v837, %v875
        %v884 = vmul.f32 %v839, %v876
        %v885 = vmul.f32 %v841, %v877
        %v886 = vmul.f32 %v843, %v878
        %v887 = vmul.f32 %v845, %v879
        %v888 = vmul.f32 %v847, %v880
        %v889 = vmul.f32 %v849, %v881
        %v890 = vpack.c.bf16 %v883, %v882
        %v891 = vpack.c.bf16 %v885, %v884
        %v892 = vpack.c.bf16 %v887, %v886
        %v893 = vpack.c.bf16 %v889, %v888
        %894 = vrot.lane.b32.xlu0 %v574, 64
        %v895 = vpop.permute.xlu0 %894
        %v898 = vsel %vm801, %v890, 0
        %900 = vmatprep.subr.bf16.mxu0 0
        %901 = vmatpush1.bf16.msra.mxu0 0
        %902 = vmatprep.subr.bf16.mxu0 0
        %903 = vmatpush1.bf16.msra.mxu0 0
        %904 = vmatprep.subr.bf16.mxu0 0
        %905 = vmatpush1.bf16.msra.mxu0 0
        %906 = vmatprep.subr.bf16.mxu0 0
        %907 = vmatpush1.bf16.msra.mxu0 0
        %908 = vmatprep.subr.bf16.mxu0 0
        %909 = vmatpush1.bf16.msra.mxu0 0
        %910 = vmatprep.subr.bf16.mxu0 0
        %911 = vmatpush1.bf16.msra.mxu0 0
        %912 = vmatprep.subr.bf16.mxu0 0
        %913 = vmatpush1.bf16.msra.mxu0 0
        %914 = vmatprep.subr.bf16.mxu0 0
        %915 = vmatpush1.bf16.msra.mxu0 %v895
        %916 = vmatprep.subr.bf16.mxu0 0
        %917 = vmatpush2.bf16.msra.mxu0 0
        %918 = vmatprep.subr.bf16.mxu0 0
        %919 = vmatpush2.bf16.msra.mxu0 0
        %920 = vmatprep.subr.bf16.mxu0 0
        %921 = vmatpush2.bf16.msra.mxu0 0
        %922 = vmatprep.subr.bf16.mxu0 0
        %923 = vmatpush2.bf16.msra.mxu0 0
        %924 = vmatprep.subr.bf16.mxu0 0
        %925 = vmatpush2.bf16.msra.mxu0 0
        %926 = vmatprep.subr.bf16.mxu0 0
        %927 = vmatpush2.bf16.msra.mxu0 0
        %928 = vmatprep.subr.bf16.mxu0 0
        %929 = vmatpush2.bf16.msra.mxu0 0
        %930 = vmatprep.subr.bf16.mxu0 0
        %931 = vmatpush2.bf16.msra.mxu0 0
        %932 = vmatprep.mubr.bf16.mxu0 0
        %933 = vmatmul.mubr.bf16.gmra.mxu0 %v898
        %v934 = vpop.f32.mrf.mxu0
        %v935 = vadd.f32 0.0, %v934
        %v936 = vpop.f32.mrf.mxu0
        %v937 = vpop.f32.mrf.mxu0
        %v938 = vadd.f32 0.0, %v937
        %v939 = vpop.f32.mrf.mxu0
        %940 = vdwg.mxu0
        %941 = vrot.lane.b32.xlu0 %v575, 64
        %v942 = vpop.permute.xlu0 %941
        %v945 = vsel %vm801, %v891, 0
        %947 = vmatprep.subr.bf16.mxu0 0
        %948 = vmatpush1.bf16.msra.mxu0 0
        %949 = vmatprep.subr.bf16.mxu0 0
        %950 = vmatpush1.bf16.msra.mxu0 0
        %951 = vmatprep.subr.bf16.mxu0 0
        %952 = vmatpush1.bf16.msra.mxu0 0
        %953 = vmatprep.subr.bf16.mxu0 0
        %954 = vmatpush1.bf16.msra.mxu0 0
        %955 = vmatprep.subr.bf16.mxu0 0
        %956 = vmatpush1.bf16.msra.mxu0 0
        %957 = vmatprep.subr.bf16.mxu0 0
        %958 = vmatpush1.bf16.msra.mxu0 0
        %959 = vmatprep.subr.bf16.mxu0 0
        %960 = vmatpush1.bf16.msra.mxu0 0
        %961 = vmatprep.subr.bf16.mxu0 0
        %962 = vmatpush1.bf16.msra.mxu0 %v942
        %963 = vmatprep.subr.bf16.mxu0 0
        %964 = vmatpush2.bf16.msra.mxu0 0
        %965 = vmatprep.subr.bf16.mxu0 0
        %966 = vmatpush2.bf16.msra.mxu0 0
        %967 = vmatprep.subr.bf16.mxu0 0
        %968 = vmatpush2.bf16.msra.mxu0 0
        %969 = vmatprep.subr.bf16.mxu0 0
        %970 = vmatpush2.bf16.msra.mxu0 0
        %971 = vmatprep.subr.bf16.mxu0 0
        %972 = vmatpush2.bf16.msra.mxu0 0
        %973 = vmatprep.subr.bf16.mxu0 0
        %974 = vmatpush2.bf16.msra.mxu0 0
        %975 = vmatprep.subr.bf16.mxu0 0
        %976 = vmatpush2.bf16.msra.mxu0 0
        %977 = vmatprep.subr.bf16.mxu0 0
        %978 = vmatpush2.bf16.msra.mxu0 0
        %979 = vmatprep.mubr.bf16.mxu0 0
        %980 = vmatmul.mubr.bf16.gmra.mxu0 %v945
        %v981 = vpop.f32.mrf.mxu0
        %v982 = vadd.f32 0.0, %v981
        %v983 = vpop.f32.mrf.mxu0
        %v984 = vpop.f32.mrf.mxu0
        %v985 = vadd.f32 0.0, %v984
        %v986 = vpop.f32.mrf.mxu0
        %987 = vdwg.mxu0
        %988 = vrot.lane.b32.xlu0 %v576, 64
        %v989 = vpop.permute.xlu0 %988
        %v992 = vsel %vm801, %v892, 0
        %994 = vmatprep.subr.bf16.mxu0 0
        %995 = vmatpush1.bf16.msra.mxu0 0
        %996 = vmatprep.subr.bf16.mxu0 0
        %997 = vmatpush1.bf16.msra.mxu0 0
        %998 = vmatprep.subr.bf16.mxu0 0
        %999 = vmatpush1.bf16.msra.mxu0 0
        %1000 = vmatprep.subr.bf16.mxu0 0
        %1001 = vmatpush1.bf16.msra.mxu0 0
        %1002 = vmatprep.subr.bf16.mxu0 0
        %1003 = vmatpush1.bf16.msra.mxu0 0
        %1004 = vmatprep.subr.bf16.mxu0 0
        %1005 = vmatpush1.bf16.msra.mxu0 0
        %1006 = vmatprep.subr.bf16.mxu0 0
        %1007 = vmatpush1.bf16.msra.mxu0 0
        %1008 = vmatprep.subr.bf16.mxu0 0
        %1009 = vmatpush1.bf16.msra.mxu0 %v989
        %1010 = vmatprep.subr.bf16.mxu0 0
        %1011 = vmatpush2.bf16.msra.mxu0 0
        %1012 = vmatprep.subr.bf16.mxu0 0
        %1013 = vmatpush2.bf16.msra.mxu0 0
        %1014 = vmatprep.subr.bf16.mxu0 0
        %1015 = vmatpush2.bf16.msra.mxu0 0
        %1016 = vmatprep.subr.bf16.mxu0 0
        %1017 = vmatpush2.bf16.msra.mxu0 0
        %1018 = vmatprep.subr.bf16.mxu0 0
        %1019 = vmatpush2.bf16.msra.mxu0 0
        %1020 = vmatprep.subr.bf16.mxu0 0
        %1021 = vmatpush2.bf16.msra.mxu0 0
        %1022 = vmatprep.subr.bf16.mxu0 0
        %1023 = vmatpush2.bf16.msra.mxu0 0
        %1024 = vmatprep.subr.bf16.mxu0 0
        %1025 = vmatpush2.bf16.msra.mxu0 0
        %1026 = vmatprep.mubr.bf16.mxu0 0
        %1027 = vmatmul.mubr.bf16.gmra.mxu0 %v992
        %v1028 = vpop.f32.mrf.mxu0
        %v1029 = vadd.f32 0.0, %v1028
        %v1030 = vpop.f32.mrf.mxu0
        %v1031 = vpop.f32.mrf.mxu0
        %v1032 = vadd.f32 0.0, %v1031
        %v1033 = vpop.f32.mrf.mxu0
        %1034 = vdwg.mxu0
        %1035 = vrot.lane.b32.xlu0 %v577, 64
        %v1036 = vpop.permute.xlu0 %1035
        %v1039 = vsel %vm801, %v893, 0
        %1041 = vmatprep.subr.bf16.mxu0 0
        %1042 = vmatpush1.bf16.msra.mxu0 0
        %1043 = vmatprep.subr.bf16.mxu0 0
        %1044 = vmatpush1.bf16.msra.mxu0 0
        %1045 = vmatprep.subr.bf16.mxu0 0
        %1046 = vmatpush1.bf16.msra.mxu0 0
        %1047 = vmatprep.subr.bf16.mxu0 0
        %1048 = vmatpush1.bf16.msra.mxu0 0
        %1049 = vmatprep.subr.bf16.mxu0 0
        %1050 = vmatpush1.bf16.msra.mxu0 0
        %1051 = vmatprep.subr.bf16.mxu0 0
        %1052 = vmatpush1.bf16.msra.mxu0 0
        %1053 = vmatprep.subr.bf16.mxu0 0
        %1054 = vmatpush1.bf16.msra.mxu0 0
        %1055 = vmatprep.subr.bf16.mxu0 0
        %1056 = vmatpush1.bf16.msra.mxu0 %v1036
        %1057 = vmatprep.subr.bf16.mxu0 0
        %1058 = vmatpush2.bf16.msra.mxu0 0
        %1059 = vmatprep.subr.bf16.mxu0 0
        %1060 = vmatpush2.bf16.msra.mxu0 0
        %1061 = vmatprep.subr.bf16.mxu0 0
        %1062 = vmatpush2.bf16.msra.mxu0 0
        %1063 = vmatprep.subr.bf16.mxu0 0
        %1064 = vmatpush2.bf16.msra.mxu0 0
        %1065 = vmatprep.subr.bf16.mxu0 0
        %1066 = vmatpush2.bf16.msra.mxu0 0
        %1067 = vmatprep.subr.bf16.mxu0 0
        %1068 = vmatpush2.bf16.msra.mxu0 0
        %1069 = vmatprep.subr.bf16.mxu0 0
        %1070 = vmatpush2.bf16.msra.mxu0 0
        %1071 = vmatprep.subr.bf16.mxu0 0
        %1072 = vmatpush2.bf16.msra.mxu0 0
        %1073 = vmatprep.mubr.bf16.mxu0 0
        %1074 = vmatmul.mubr.bf16.gmra.mxu0 %v1039
        %v1075 = vpop.f32.mrf.mxu0
        %v1076 = vadd.f32 0.0, %v1075
        %v1077 = vpop.f32.mrf.mxu0
        %v1078 = vpop.f32.mrf.mxu0
        %v1079 = vadd.f32 0.0, %v1078
        %v1080 = vpop.f32.mrf.mxu0
        %1081 = vdwg.mxu0
        %1084 = vrot.lane.b32.xlu0 %v982, 8
        %v1085 = vpop.permute.xlu0 %1084
        %1086 = vrot.lane.b32.xlu0 %v985, 8
        %v1087 = vpop.permute.xlu0 %1086
        %1092 = vrot.lane.b32.xlu0 %v1029, 16
        %v1093 = vpop.permute.xlu0 %1092
        %1094 = vrot.lane.b32.xlu0 %v1032, 16
        %v1095 = vpop.permute.xlu0 %1094
        %1100 = vrot.lane.b32.xlu0 %v1076, 24
        %v1101 = vpop.permute.xlu0 %1100
        %1102 = vrot.lane.b32.xlu0 %v1079, 24
        %v1103 = vpop.permute.xlu0 %1102
        %v1106 = vsel %vm581, %v935, %v1085
        %v1107 = vsel %vm581, %v938, %v1087
        %v1108 = vsel %vm801, %v1106, %v1093
        %v1109 = vsel %vm801, %v1107, %v1095
        %vm1110 = vcmask 195584
        %v1111 = vsel %vm1110, %v1108, %v1101
        %v1112 = vsel %vm1110, %v1109, %v1103
        %v1113 = vpack.c.bf16 %v1112, %v1111
        %v1114 = vlaneseq
        %v1115 = vshrl.u32 %v1114, 7
        %v1116 = vsub.s32 2, %v1115
        %v1117 = vrot.slane %v492, %v1116
        %v1122 = vunpack.c.l.b16 %v476
        %v1123 = vunpack.c.l.b16 %v477
        %v1124 = vunpack.c.l.b16 %v478
        %v1125 = vunpack.c.l.b16 %v479
        %v1126 = vpack.c.b16 %v1123, %v1122
        %v1127 = vpack.c.b16 %v1125, %v1124
        %v1131 = vsel %vm427, %v1113, 0
        %1133 = vmatprep.subr.bf16.mxu0 0
        %1134 = vmatpush1.bf16.msra.mxu0 0
        %1135 = vmatprep.subr.bf16.mxu0 0
        %1136 = vmatpush1.bf16.msra.mxu0 0
        %1137 = vmatprep.subr.bf16.mxu0 0
        %1138 = vmatpush1.bf16.msra.mxu0 0
        %1139 = vmatprep.subr.bf16.mxu0 0
        %1140 = vmatpush1.bf16.msra.mxu0 0
        %1141 = vmatprep.subr.bf16.mxu0 0
        %1142 = vmatpush1.bf16.msra.mxu0 0
        %1143 = vmatprep.subr.bf16.mxu0 0
        %1144 = vmatpush1.bf16.msra.mxu0 0
        %1145 = vmatprep.subr.bf16.mxu0 0
        %1146 = vmatpush1.bf16.msra.mxu0 %v1127
        %1147 = vmatprep.subr.bf16.mxu0 0
        %1148 = vmatpush1.bf16.msra.mxu0 %v1126
        %1149 = vmatprep.subr.bf16.mxu0 0
        %1150 = vmatpush2.bf16.msra.mxu0 0
        %1151 = vmatprep.subr.bf16.mxu0 0
        %1152 = vmatpush2.bf16.msra.mxu0 0
        %1153 = vmatprep.subr.bf16.mxu0 0
        %1154 = vmatpush2.bf16.msra.mxu0 0
        %1155 = vmatprep.subr.bf16.mxu0 0
        %1156 = vmatpush2.bf16.msra.mxu0 0
        %1157 = vmatprep.subr.bf16.mxu0 0
        %1158 = vmatpush2.bf16.msra.mxu0 0
        %1159 = vmatprep.subr.bf16.mxu0 0
        %1160 = vmatpush2.bf16.msra.mxu0 0
        %1161 = vmatprep.subr.bf16.mxu0 0
        %1162 = vmatpush2.bf16.msra.mxu0 0
        %1163 = vmatprep.subr.bf16.mxu0 0
        %1164 = vmatpush2.bf16.msra.mxu0 0
        %1165 = vmatprep.mubr.bf16.mxu0 0
        %1166 = vmatmul.mubr.bf16.gmra.mxu0 %v1131
        %v1167 = vpop.f32.mrf.mxu0
        %v1168 = vadd.f32 %v1117, %v1167
        %v1169 = vpop.f32.mrf.mxu0
        %v1170 = vpop.f32.mrf.mxu0
        %v1171 = vadd.f32 %v1117, %v1170
        %v1172 = vpop.f32.mrf.mxu0
        %1173 = vdwg.mxu0
        %v1174 = vadd.f32 %v466, %v1168
        %v1175 = vadd.f32 %v469, %v1171
        %v1176 = vsel %vm427, %v1174, 0.0
        %1177 = vadd.xlane.f32.xlu0 %v1176
        %v1178 = vpop.xlane.xlu0 %1177
        %v1179 = vsel %vm427, %v1175, 0.0
        %1180 = vadd.xlane.f32.xlu0 %v1179
        %v1181 = vpop.xlane.xlu0 %1180
        %v1182 = vrcp.pop 32.0
        %v1183 = vmul.f32 %v1178, %v1182
        %v1184 = vmul.f32 %v1181, %v1182
        %v1185 = vsub.f32 %v1174, %v1183
        %v1186 = vsub.f32 %v1175, %v1184
        %v1187 = vmul.f32 %v1185, %v1185
        %v1188 = vmul.f32 %v1186, %v1186
        %v1189 = vsel %vm427, %v1187, 0.0
        %1190 = vadd.xlane.f32.xlu0 %v1189
        %v1191 = vpop.xlane.xlu0 %1190
        %v1192 = vsel %vm427, %v1188, 0.0
        %1193 = vadd.xlane.f32.xlu0 %v1192
        %v1194 = vpop.xlane.xlu0 %1193
        %v1195 = vmul.f32 %v1191, %v1182
        %v1196 = vmul.f32 %v1194, %v1182
        %v1197 = vadd.f32 %v1195, 1e-05
        %v1198 = vadd.f32 %v1196, 1e-05
        %v1199 = vrsqrt.pop %v1197
        %v1200 = vrsqrt.pop %v1198
        %v1201 = vmul.f32 %v1185, %v1199
        %v1202 = vmul.f32 %v1186, %v1200
        %v1203 = vlaneseq
        %v1204 = vshrl.u32 %v1203, 7
        %v1205 = vsub.s32 4, %v1204
        %v1206 = vrot.slane %v492, %v1205
        %v1207 = vmul.f32 %v1201, %v1206
        %v1208 = vmul.f32 %v1202, %v1206
        %v1209 = vlaneseq
        %v1210 = vshrl.u32 %v1209, 7
        %v1211 = vsub.s32 5, %v1210
        %v1212 = vrot.slane %v492, %v1211
        %v1213 = vadd.f32 %v1207, %v1212
        %v1214 = vadd.f32 %v1208, %v1212
        %v1215 = vpack.c.bf16 %v1214, %v1213
        %v1216 = vlaneseq
        %v1217 = vshrl.u32 %v1216, 7
        %v1218 = vsub.s32 1, %v1217
        %v1219 = vrot.slane %v492, %v1218
        %v1224 = vunpack.c.l.b16 %v480
        %v1225 = vunpack.c.l.b16 %v481
        %v1226 = vunpack.c.l.b16 %v482
        %v1227 = vunpack.c.l.b16 %v483
        %v1228 = vpack.c.b16 %v1225, %v1224
        %v1229 = vpack.c.b16 %v1227, %v1226
        %v1233 = vsel %vm427, %v1215, 0
        %1235 = vmatprep.subr.bf16.mxu0 0
        %1236 = vmatpush1.bf16.msra.mxu0 0
        %1237 = vmatprep.subr.bf16.mxu0 0
        %1238 = vmatpush1.bf16.msra.mxu0 0
        %1239 = vmatprep.subr.bf16.mxu0 0
        %1240 = vmatpush1.bf16.msra.mxu0 0
        %1241 = vmatprep.subr.bf16.mxu0 0
        %1242 = vmatpush1.bf16.msra.mxu0 0
        %1243 = vmatprep.subr.bf16.mxu0 0
        %1244 = vmatpush1.bf16.msra.mxu0 0
        %1245 = vmatprep.subr.bf16.mxu0 0
        %1246 = vmatpush1.bf16.msra.mxu0 0
        %1247 = vmatprep.subr.bf16.mxu0 0
        %1248 = vmatpush1.bf16.msra.mxu0 %v1229
        %1249 = vmatprep.subr.bf16.mxu0 0
        %1250 = vmatpush1.bf16.msra.mxu0 %v1228
        %1251 = vmatprep.subr.bf16.mxu0 0
        %1252 = vmatpush2.bf16.msra.mxu0 0
        %1253 = vmatprep.subr.bf16.mxu0 0
        %1254 = vmatpush2.bf16.msra.mxu0 0
        %1255 = vmatprep.subr.bf16.mxu0 0
        %1256 = vmatpush2.bf16.msra.mxu0 0
        %1257 = vmatprep.subr.bf16.mxu0 0
        %1258 = vmatpush2.bf16.msra.mxu0 0
        %1259 = vmatprep.subr.bf16.mxu0 0
        %1260 = vmatpush2.bf16.msra.mxu0 0
        %1261 = vmatprep.subr.bf16.mxu0 0
        %1262 = vmatpush2.bf16.msra.mxu0 0
        %1263 = vmatprep.subr.bf16.mxu0 0
        %1264 = vmatpush2.bf16.msra.mxu0 0
        %1265 = vmatprep.subr.bf16.mxu0 0
        %1266 = vmatpush2.bf16.msra.mxu0 0
        %1267 = vmatprep.mubr.bf16.mxu0 0
        %1268 = vmatmul.mubr.bf16.gmra.mxu0 %v1233
        %v1269 = vpop.f32.mrf.mxu0
        %v1270 = vadd.f32 %v1219, %v1269
        %v1271 = vpop.f32.mrf.mxu0
        %v1272 = vpop.f32.mrf.mxu0
        %v1273 = vadd.f32 %v1219, %v1272
        %v1274 = vpop.f32.mrf.mxu0
        %1275 = vdwg.mxu0
        %v1276 = vmax.f32 %v1270, 0.0
        %v1277 = vmax.f32 %v1273, 0.0
        %v1278 = vpack.c.bf16 %v1277, %v1276
        %v1279 = vlaneseq
        %v1280 = vshrl.u32 %v1279, 7
        %v1281 = vsub.s32 3, %v1280
        %v1282 = vrot.slane %v492, %v1281
        %v1291 = vunpack.c.l.b16 %v484
        %v1292 = vunpack.c.l.b16 %v485
        %v1293 = vunpack.c.l.b16 %v486
        %v1294 = vunpack.c.l.b16 %v487
        %v1295 = vunpack.c.l.b16 %v488
        %v1296 = vunpack.c.l.b16 %v489
        %v1297 = vunpack.c.l.b16 %v490
        %v1298 = vunpack.c.l.b16 %v491
        %v1299 = vpack.c.b16 %v1292, %v1291
        %v1300 = vpack.c.b16 %v1294, %v1293
        %v1301 = vpack.c.b16 %v1296, %v1295
        %v1302 = vpack.c.b16 %v1298, %v1297
        %vm1307 = vcmask 523264
        %v1309 = vsel %vm1307, %v1278, 0
        %1311 = vmatprep.subr.bf16.mxu0 0
        %1312 = vmatpush1.bf16.msra.mxu0 0
        %1313 = vmatprep.subr.bf16.mxu0 0
        %1314 = vmatpush1.bf16.msra.mxu0 0
        %1315 = vmatprep.subr.bf16.mxu0 0
        %1316 = vmatpush1.bf16.msra.mxu0 0
        %1317 = vmatprep.subr.bf16.mxu0 0
        %1318 = vmatpush1.bf16.msra.mxu0 0
        %1319 = vmatprep.subr.bf16.mxu0 0
        %1320 = vmatpush1.bf16.msra.mxu0 %v1302
        %1321 = vmatprep.subr.bf16.mxu0 0
        %1322 = vmatpush1.bf16.msra.mxu0 %v1301
        %1323 = vmatprep.subr.bf16.mxu0 0
        %1324 = vmatpush1.bf16.msra.mxu0 %v1300
        %1325 = vmatprep.subr.bf16.mxu0 0
        %1326 = vmatpush1.bf16.msra.mxu0 %v1299
        %1327 = vmatprep.subr.bf16.mxu0 0
        %1328 = vmatpush2.bf16.msra.mxu0 0
        %1329 = vmatprep.subr.bf16.mxu0 0
        %1330 = vmatpush2.bf16.msra.mxu0 0
        %1331 = vmatprep.subr.bf16.mxu0 0
        %1332 = vmatpush2.bf16.msra.mxu0 0
        %1333 = vmatprep.subr.bf16.mxu0 0
        %1334 = vmatpush2.bf16.msra.mxu0 0
        %1335 = vmatprep.subr.bf16.mxu0 0
        %1336 = vmatpush2.bf16.msra.mxu0 0
        %1337 = vmatprep.subr.bf16.mxu0 0
        %1338 = vmatpush2.bf16.msra.mxu0 0
        %1339 = vmatprep.subr.bf16.mxu0 0
        %1340 = vmatpush2.bf16.msra.mxu0 0
        %1341 = vmatprep.subr.bf16.mxu0 0
        %1342 = vmatpush2.bf16.msra.mxu0 0
        %1343 = vmatprep.mubr.bf16.mxu0 0
        %1344 = vmatmul.mubr.bf16.gmra.mxu0 %v1309
        %v1345 = vpop.f32.mrf.mxu0
        %v1346 = vadd.f32 %v1282, %v1345
        %v1347 = vpop.f32.mrf.mxu0
        %v1348 = vpop.f32.mrf.mxu0
        %v1349 = vadd.f32 %v1282, %v1348
        %v1350 = vpop.f32.mrf.mxu0
        %1351 = vdwg.mxu0
        %v1352 = vadd.f32 %v1213, %v1346
        %v1353 = vadd.f32 %v1214, %v1349
        %v1354 = vsel %vm427, %v1352, 0.0
        %1355 = vadd.xlane.f32.xlu0 %v1354
        %v1356 = vpop.xlane.xlu0 %1355
        %v1357 = vsel %vm427, %v1353, 0.0
        %1358 = vadd.xlane.f32.xlu0 %v1357
        %v1359 = vpop.xlane.xlu0 %1358
        %v1360 = vmul.f32 %v1356, %v1182
        %v1361 = vmul.f32 %v1359, %v1182
        %v1362 = vsub.f32 %v1352, %v1360
        %v1363 = vsub.f32 %v1353, %v1361
        %v1364 = vmul.f32 %v1362, %v1362
        %v1365 = vmul.f32 %v1363, %v1363
        %v1366 = vsel %vm427, %v1364, 0.0
        %1367 = vadd.xlane.f32.xlu0 %v1366
        %v1368 = vpop.xlane.xlu0 %1367
        %v1369 = vsel %vm427, %v1365, 0.0
        %1370 = vadd.xlane.f32.xlu0 %v1369
        %v1371 = vpop.xlane.xlu0 %1370
        %v1372 = vmul.f32 %v1368, %v1182
        %v1373 = vmul.f32 %v1371, %v1182
        %v1374 = vadd.f32 %v1372, 1e-05
        %v1375 = vadd.f32 %v1373, 1e-05
        %v1376 = vrsqrt.pop %v1374
        %v1377 = vrsqrt.pop %v1375
        %v1378 = vmul.f32 %v1362, %v1376
        %v1379 = vmul.f32 %v1363, %v1377
        %v1380 = vlaneseq
        %v1381 = vshrl.u32 %v1380, 7
        %v1382 = vsub.s32 6, %v1381
        %v1383 = vrot.slane %v492, %v1382
        %v1384 = vmul.f32 %v1378, %v1383
        %v1385 = vmul.f32 %v1379, %v1383
        %v1386 = vlaneseq
        %v1387 = vshrl.u32 %v1386, 7
        %v1388 = vsub.s32 7, %v1387
        %v1389 = vrot.slane %v492, %v1388
        %v1390 = vadd.f32 %v1384, %v1389
        %v1391 = vadd.f32 %v1385, %v1389
        %s1392 = scalar_lea.vmem %s4, 16
        %v1393 = vld [vmem:[%s1392] sm:$0xf]
        %v1394 = vld [vmem:[%s1392 + $0x4] sm:$0xf]
        %v1395 = vld [vmem:[%s1392 + $0x8] sm:$0xf]
        %v1396 = vld [vmem:[%s1392 + $0xc] sm:$0xf]
        %s1397 = scalar_lea.vmem %s5, 16
        %v1398 = vld [vmem:[%s1397] sm:$0xf]
        %v1399 = vld [vmem:[%s1397 + $0x4] sm:$0xf]
        %v1400 = vld [vmem:[%s1397 + $0x8] sm:$0xf]
        %v1401 = vld [vmem:[%s1397 + $0xc] sm:$0xf]
        %s1402 = scalar_lea.vmem [#allocation7], 16
        %v1403 = vld [vmem:[%s1402] sm:$0xf]
        %v1404 = vld [vmem:[%s1402 + $0x4] sm:$0xf]
        %v1405 = vld [vmem:[%s1402 + $0x8] sm:$0xf]
        %v1406 = vld [vmem:[%s1402 + $0xc] sm:$0xf]
        %s1407 = scalar_lea.vmem %s7, 32
        %v1408 = vld [vmem:[%s1407] sm:$0xf]
        %v1409 = vld [vmem:[%s1407 + $0x4] sm:$0xf]
        %v1410 = vld [vmem:[%s1407 + $0x8] sm:$0xf]
        %v1411 = vld [vmem:[%s1407 + $0xc] sm:$0xf]
        %v1412 = vld [vmem:[%s1407 + $0x10] sm:$0xf]
        %v1413 = vld [vmem:[%s1407 + $0x14] sm:$0xf]
        %v1414 = vld [vmem:[%s1407 + $0x18] sm:$0xf]
        %v1415 = vld [vmem:[%s1407 + $0x1c] sm:$0xf]
        %s1416 = scalar_lea.vmem [#allocation8], 8
        %v1417 = vld [vmem:[%s1416] sm:$0xff]
        %v1418 = vpack.c.bf16 %v1391, %v1390
        %v1419 = vlaneseq
        %v1420 = vshrl.u32 %v1419, 7
        %v1421 = vsub.s32 0, %v1420
        %v1422 = vrot.slane %v1417, %v1421
        %v1427 = vunpack.c.l.b16 %v1393
        %v1428 = vunpack.c.l.b16 %v1394
        %v1429 = vunpack.c.l.b16 %v1395
        %v1430 = vunpack.c.l.b16 %v1396
        %v1431 = vpack.c.b16 %v1428, %v1427
        %v1432 = vpack.c.b16 %v1430, %v1429
        %v1436 = vsel %vm427, %v1418, 0
        %1438 = vmatprep.subr.bf16.mxu0 0
        %1439 = vmatpush1.bf16.msra.mxu0 0
        %1440 = vmatprep.subr.bf16.mxu0 0
        %1441 = vmatpush1.bf16.msra.mxu0 0
        %1442 = vmatprep.subr.bf16.mxu0 0
        %1443 = vmatpush1.bf16.msra.mxu0 0
        %1444 = vmatprep.subr.bf16.mxu0 0
        %1445 = vmatpush1.bf16.msra.mxu0 0
        %1446 = vmatprep.subr.bf16.mxu0 0
        %1447 = vmatpush1.bf16.msra.mxu0 0
        %1448 = vmatprep.subr.bf16.mxu0 0
        %1449 = vmatpush1.bf16.msra.mxu0 0
        %1450 = vmatprep.subr.bf16.mxu0 0
        %1451 = vmatpush1.bf16.msra.mxu0 %v1432
        %1452 = vmatprep.subr.bf16.mxu0 0
        %1453 = vmatpush1.bf16.msra.mxu0 %v1431
        %1454 = vmatprep.subr.bf16.mxu0 0
        %1455 = vmatpush2.bf16.msra.mxu0 0
        %1456 = vmatprep.subr.bf16.mxu0 0
        %1457 = vmatpush2.bf16.msra.mxu0 0
        %1458 = vmatprep.subr.bf16.mxu0 0
        %1459 = vmatpush2.bf16.msra.mxu0 0
        %1460 = vmatprep.subr.bf16.mxu0 0
        %1461 = vmatpush2.bf16.msra.mxu0 0
        %1462 = vmatprep.subr.bf16.mxu0 0
        %1463 = vmatpush2.bf16.msra.mxu0 0
        %1464 = vmatprep.subr.bf16.mxu0 0
        %1465 = vmatpush2.bf16.msra.mxu0 0
        %1466 = vmatprep.subr.bf16.mxu0 0
        %1467 = vmatpush2.bf16.msra.mxu0 0
        %1468 = vmatprep.subr.bf16.mxu0 0
        %1469 = vmatpush2.bf16.msra.mxu0 0
        %1470 = vmatprep.mubr.bf16.mxu0 0
        %1471 = vmatmul.mubr.bf16.gmra.mxu0 %v1436
        %v1472 = vpop.f32.mrf.mxu0
        %v1473 = vadd.f32 %v1422, %v1472
        %v1474 = vpop.f32.mrf.mxu0
        %v1475 = vpop.f32.mrf.mxu0
        %v1476 = vadd.f32 %v1422, %v1475
        %v1477 = vpop.f32.mrf.mxu0
        %1478 = vdwg.mxu0
        %1481 = vrot.lane.b32.xlu0 %v1473, 120
        %v1482 = vpop.permute.xlu0 %1481
        %1483 = vrot.lane.b32.xlu0 %v1476, 120
        %v1484 = vpop.permute.xlu0 %1483
        %1487 = vrot.lane.b32.xlu0 %v1473, 112
        %v1488 = vpop.permute.xlu0 %1487
        %1489 = vrot.lane.b32.xlu0 %v1476, 112
        %v1490 = vpop.permute.xlu0 %1489
        %1493 = vrot.lane.b32.xlu0 %v1473, 104
        %v1494 = vpop.permute.xlu0 %1493
        %1495 = vrot.lane.b32.xlu0 %v1476, 104
        %v1496 = vpop.permute.xlu0 %1495
        %v1499 = vpack.c.bf16 %v1476, %v1473
        %v1500 = vpack.c.bf16 %v1484, %v1482
        %v1501 = vpack.c.bf16 %v1490, %v1488
        %v1502 = vpack.c.bf16 %v1496, %v1494
        %1504 = vrot.lane.b32.xlu0 %v1499, 96
        %v1505 = vpop.permute.xlu0 %1504
        %v1507 = vsel %vm581, %v1499, 0
        %v1510 = vsel %vm581, %v1505, 0
        %1512 = vmatprep.subr.bf16.mxu0 0
        %1513 = vmatpush1.bf16.xpose.msra.mxu0 0
        %1514 = vmatprep.subr.bf16.mxu0 0
        %1515 = vmatpush1.bf16.xpose.msra.mxu0 0
        %1516 = vmatprep.subr.bf16.mxu0 0
        %1517 = vmatpush1.bf16.xpose.msra.mxu0 0
        %1518 = vmatprep.subr.bf16.mxu0 0
        %1519 = vmatpush1.bf16.xpose.msra.mxu0 0
        %1520 = vmatprep.subr.bf16.mxu0 0
        %1521 = vmatpush1.bf16.xpose.msra.mxu0 0
        %1522 = vmatprep.subr.bf16.mxu0 0
        %1523 = vmatpush1.bf16.xpose.msra.mxu0 0
        %1524 = vmatprep.subr.bf16.mxu0 0
        %1525 = vmatpush1.bf16.xpose.msra.mxu0 0
        %1526 = vmatprep.subr.bf16.mxu0 0
        %1527 = vmatpush1.bf16.xpose.msra.mxu0 %v1510
        %1528 = vmatprep.subr.bf16.mxu0 0
        %1529 = vmatpush2.bf16.xpose.msra.mxu0 0
        %1530 = vmatprep.subr.bf16.mxu0 0
        %1531 = vmatpush2.bf16.xpose.msra.mxu0 0
        %1532 = vmatprep.subr.bf16.mxu0 0
        %1533 = vmatpush2.bf16.xpose.msra.mxu0 0
        %1534 = vmatprep.subr.bf16.mxu0 0
        %1535 = vmatpush2.bf16.xpose.msra.mxu0 0
        %1536 = vmatprep.subr.bf16.mxu0 0
        %1537 = vmatpush2.bf16.xpose.msra.mxu0 0
        %1538 = vmatprep.subr.bf16.mxu0 0
        %1539 = vmatpush2.bf16.xpose.msra.mxu0 0
        %1540 = vmatprep.subr.bf16.mxu0 0
        %1541 = vmatpush2.bf16.xpose.msra.mxu0 0
        %1542 = vmatprep.subr.bf16.mxu0 0
        %1543 = vmatpush2.bf16.xpose.msra.mxu0 0
        %1544 = vmatprep.mubr.bf16.mxu0 0
        %1545 = vmatmul.mubr.bf16.gmra.mxu0 %v1507
        %v1546 = vpop.f32.mrf.mxu0
        %v1547 = vadd.f32 0.0, %v1546
        %v1548 = vpop.f32.mrf.mxu0
        %v1549 = vpop.f32.mrf.mxu0
        %v1550 = vadd.f32 0.0, %v1549
        %v1551 = vpop.f32.mrf.mxu0
        %1552 = vdwg.mxu0
        %1554 = vrot.lane.b32.xlu0 %v1500, 96
        %v1555 = vpop.permute.xlu0 %1554
        %v1557 = vsel %vm581, %v1500, 0
        %v1560 = vsel %vm581, %v1555, 0
        %1562 = vmatprep.subr.bf16.mxu0 0
        %1563 = vmatpush1.bf16.xpose.msra.mxu0 0
        %1564 = vmatprep.subr.bf16.mxu0 0
        %1565 = vmatpush1.bf16.xpose.msra.mxu0 0
        %1566 = vmatprep.subr.bf16.mxu0 0
        %1567 = vmatpush1.bf16.xpose.msra.mxu0 0
        %1568 = vmatprep.subr.bf16.mxu0 0
        %1569 = vmatpush1.bf16.xpose.msra.mxu0 0
        %1570 = vmatprep.subr.bf16.mxu0 0
        %1571 = vmatpush1.bf16.xpose.msra.mxu0 0
        %1572 = vmatprep.subr.bf16.mxu0 0
        %1573 = vmatpush1.bf16.xpose.msra.mxu0 0
        %1574 = vmatprep.subr.bf16.mxu0 0
        %1575 = vmatpush1.bf16.xpose.msra.mxu0 0
        %1576 = vmatprep.subr.bf16.mxu0 0
        %1577 = vmatpush1.bf16.xpose.msra.mxu0 %v1560
        %1578 = vmatprep.subr.bf16.mxu0 0
        %1579 = vmatpush2.bf16.xpose.msra.mxu0 0
        %1580 = vmatprep.subr.bf16.mxu0 0
        %1581 = vmatpush2.bf16.xpose.msra.mxu0 0
        %1582 = vmatprep.subr.bf16.mxu0 0
        %1583 = vmatpush2.bf16.xpose.msra.mxu0 0
        %1584 = vmatprep.subr.bf16.mxu0 0
        %1585 = vmatpush2.bf16.xpose.msra.mxu0 0
        %1586 = vmatprep.subr.bf16.mxu0 0
        %1587 = vmatpush2.bf16.xpose.msra.mxu0 0
        %1588 = vmatprep.subr.bf16.mxu0 0
        %1589 = vmatpush2.bf16.xpose.msra.mxu0 0
        %1590 = vmatprep.subr.bf16.mxu0 0
        %1591 = vmatpush2.bf16.xpose.msra.mxu0 0
        %1592 = vmatprep.subr.bf16.mxu0 0
        %1593 = vmatpush2.bf16.xpose.msra.mxu0 0
        %1594 = vmatprep.mubr.bf16.mxu0 0
        %1595 = vmatmul.mubr.bf16.gmra.mxu0 %v1557
        %v1596 = vpop.f32.mrf.mxu0
        %v1597 = vadd.f32 0.0, %v1596
        %v1598 = vpop.f32.mrf.mxu0
        %v1599 = vpop.f32.mrf.mxu0
        %v1600 = vadd.f32 0.0, %v1599
        %v1601 = vpop.f32.mrf.mxu0
        %1602 = vdwg.mxu0
        %1604 = vrot.lane.b32.xlu0 %v1501, 96
        %v1605 = vpop.permute.xlu0 %1604
        %v1607 = vsel %vm581, %v1501, 0
        %v1610 = vsel %vm581, %v1605, 0
        %1612 = vmatprep.subr.bf16.mxu0 0
        %1613 = vmatpush1.bf16.xpose.msra.mxu0 0
        %1614 = vmatprep.subr.bf16.mxu0 0
        %1615 = vmatpush1.bf16.xpose.msra.mxu0 0
        %1616 = vmatprep.subr.bf16.mxu0 0
        %1617 = vmatpush1.bf16.xpose.msra.mxu0 0
        %1618 = vmatprep.subr.bf16.mxu0 0
        %1619 = vmatpush1.bf16.xpose.msra.mxu0 0
        %1620 = vmatprep.subr.bf16.mxu0 0
        %1621 = vmatpush1.bf16.xpose.msra.mxu0 0
        %1622 = vmatprep.subr.bf16.mxu0 0
        %1623 = vmatpush1.bf16.xpose.msra.mxu0 0
        %1624 = vmatprep.subr.bf16.mxu0 0
        %1625 = vmatpush1.bf16.xpose.msra.mxu0 0
        %1626 = vmatprep.subr.bf16.mxu0 0
        %1627 = vmatpush1.bf16.xpose.msra.mxu0 %v1610
        %1628 = vmatprep.subr.bf16.mxu0 0
        %1629 = vmatpush2.bf16.xpose.msra.mxu0 0
        %1630 = vmatprep.subr.bf16.mxu0 0
        %1631 = vmatpush2.bf16.xpose.msra.mxu0 0
        %1632 = vmatprep.subr.bf16.mxu0 0
        %1633 = vmatpush2.bf16.xpose.msra.mxu0 0
        %1634 = vmatprep.subr.bf16.mxu0 0
        %1635 = vmatpush2.bf16.xpose.msra.mxu0 0
        %1636 = vmatprep.subr.bf16.mxu0 0
        %1637 = vmatpush2.bf16.xpose.msra.mxu0 0
        %1638 = vmatprep.subr.bf16.mxu0 0
        %1639 = vmatpush2.bf16.xpose.msra.mxu0 0
        %1640 = vmatprep.subr.bf16.mxu0 0
        %1641 = vmatpush2.bf16.xpose.msra.mxu0 0
        %1642 = vmatprep.subr.bf16.mxu0 0
        %1643 = vmatpush2.bf16.xpose.msra.mxu0 0
        %1644 = vmatprep.mubr.bf16.mxu0 0
        %1645 = vmatmul.mubr.bf16.gmra.mxu0 %v1607
        %v1646 = vpop.f32.mrf.mxu0
        %v1647 = vadd.f32 0.0, %v1646
        %v1648 = vpop.f32.mrf.mxu0
        %v1649 = vpop.f32.mrf.mxu0
        %v1650 = vadd.f32 0.0, %v1649
        %v1651 = vpop.f32.mrf.mxu0
        %1652 = vdwg.mxu0
        %1654 = vrot.lane.b32.xlu0 %v1502, 96
        %v1655 = vpop.permute.xlu0 %1654
        %v1657 = vsel %vm581, %v1502, 0
        %v1660 = vsel %vm581, %v1655, 0
        %1662 = vmatprep.subr.bf16.mxu0 0
        %1663 = vmatpush1.bf16.xpose.msra.mxu0 0
        %1664 = vmatprep.subr.bf16.mxu0 0
        %1665 = vmatpush1.bf16.xpose.msra.mxu0 0
        %1666 = vmatprep.subr.bf16.mxu0 0
        %1667 = vmatpush1.bf16.xpose.msra.mxu0 0
        %1668 = vmatprep.subr.bf16.mxu0 0
        %1669 = vmatpush1.bf16.xpose.msra.mxu0 0
        %1670 = vmatprep.subr.bf16.mxu0 0
        %1671 = vmatpush1.bf16.xpose.msra.mxu0 0
        %1672 = vmatprep.subr.bf16.mxu0 0
        %1673 = vmatpush1.bf16.xpose.msra.mxu0 0
        %1674 = vmatprep.subr.bf16.mxu0 0
        %1675 = vmatpush1.bf16.xpose.msra.mxu0 0
        %1676 = vmatprep.subr.bf16.mxu0 0
        %1677 = vmatpush1.bf16.xpose.msra.mxu0 %v1660
        %1678 = vmatprep.subr.bf16.mxu0 0
        %1679 = vmatpush2.bf16.xpose.msra.mxu0 0
        %1680 = vmatprep.subr.bf16.mxu0 0
        %1681 = vmatpush2.bf16.xpose.msra.mxu0 0
        %1682 = vmatprep.subr.bf16.mxu0 0
        %1683 = vmatpush2.bf16.xpose.msra.mxu0 0
        %1684 = vmatprep.subr.bf16.mxu0 0
        %1685 = vmatpush2.bf16.xpose.msra.mxu0 0
        %1686 = vmatprep.subr.bf16.mxu0 0
        %1687 = vmatpush2.bf16.xpose.msra.mxu0 0
        %1688 = vmatprep.subr.bf16.mxu0 0
        %1689 = vmatpush2.bf16.xpose.msra.mxu0 0
        %1690 = vmatprep.subr.bf16.mxu0 0
        %1691 = vmatpush2.bf16.xpose.msra.mxu0 0
        %1692 = vmatprep.subr.bf16.mxu0 0
        %1693 = vmatpush2.bf16.xpose.msra.mxu0 0
        %1694 = vmatprep.mubr.bf16.mxu0 0
        %1695 = vmatmul.mubr.bf16.gmra.mxu0 %v1657
        %v1696 = vpop.f32.mrf.mxu0
        %v1697 = vadd.f32 0.0, %v1696
        %v1698 = vpop.f32.mrf.mxu0
        %v1699 = vpop.f32.mrf.mxu0
        %v1700 = vadd.f32 0.0, %v1699
        %v1701 = vpop.f32.mrf.mxu0
        %1702 = vdwg.mxu0
        %v1703 = vmul.f32 %v1547, 0.35355338
        %v1704 = vmul.f32 %v1550, 0.35355338
        %v1705 = vmul.f32 %v1597, 0.35355338
        %v1706 = vmul.f32 %v1600, 0.35355338
        %v1707 = vmul.f32 %v1647, 0.35355338
        %v1708 = vmul.f32 %v1650, 0.35355338
        %v1709 = vmul.f32 %v1697, 0.35355338
        %v1710 = vmul.f32 %v1700, 0.35355338
        %v1711 = vadd.f32 %v1703, %v791
        %v1712 = vadd.f32 %v1704, %v791
        %v1713 = vadd.f32 %v1705, %v791
        %v1714 = vadd.f32 %v1706, %v791
        %v1715 = vadd.f32 %v1707, %v791
        %v1716 = vadd.f32 %v1708, %v791
        %v1717 = vadd.f32 %v1709, %v791
        %v1718 = vadd.f32 %v1710, %v791
        %v1719 = vsel %vm801, %v1711, -inf
        %1720 = vmax.xlane.f32.xlu0 %v1719
        %v1721 = vpop.xlane.xlu0 %1720
        %v1722 = vsel %vm801, %v1712, -inf
        %1723 = vmax.xlane.f32.xlu0 %v1722
        %v1724 = vpop.xlane.xlu0 %1723
        %v1725 = vsel %vm801, %v1713, -inf
        %1726 = vmax.xlane.f32.xlu0 %v1725
        %v1727 = vpop.xlane.xlu0 %1726
        %v1728 = vsel %vm801, %v1714, -inf
        %1729 = vmax.xlane.f32.xlu0 %v1728
        %v1730 = vpop.xlane.xlu0 %1729
        %v1731 = vsel %vm801, %v1715, -inf
        %1732 = vmax.xlane.f32.xlu0 %v1731
        %v1733 = vpop.xlane.xlu0 %1732
        %v1734 = vsel %vm801, %v1716, -inf
        %1735 = vmax.xlane.f32.xlu0 %v1734
        %v1736 = vpop.xlane.xlu0 %1735
        %v1737 = vsel %vm801, %v1717, -inf
        %1738 = vmax.xlane.f32.xlu0 %v1737
        %v1739 = vpop.xlane.xlu0 %1738
        %v1740 = vsel %vm801, %v1718, -inf
        %1741 = vmax.xlane.f32.xlu0 %v1740
        %v1742 = vpop.xlane.xlu0 %1741
        %v1743 = vsub.f32 %v1711, %v1721
        %v1744 = vsub.f32 %v1712, %v1724
        %v1745 = vsub.f32 %v1713, %v1727
        %v1746 = vsub.f32 %v1714, %v1730
        %v1747 = vsub.f32 %v1715, %v1733
        %v1748 = vsub.f32 %v1716, %v1736
        %v1749 = vsub.f32 %v1717, %v1739
        %v1750 = vsub.f32 %v1718, %v1742
        %v1751 = vmul.f32 %v1743, 1.442695
        %v1752 = vpow.pop %v1751
        %v1753 = vmul.f32 %v1744, 1.442695
        %v1754 = vpow.pop %v1753
        %v1755 = vmul.f32 %v1745, 1.442695
        %v1756 = vpow.pop %v1755
        %v1757 = vmul.f32 %v1746, 1.442695
        %v1758 = vpow.pop %v1757
        %v1759 = vmul.f32 %v1747, 1.442695
        %v1760 = vpow.pop %v1759
        %v1761 = vmul.f32 %v1748, 1.442695
        %v1762 = vpow.pop %v1761
        %v1763 = vmul.f32 %v1749, 1.442695
        %v1764 = vpow.pop %v1763
        %v1765 = vmul.f32 %v1750, 1.442695
        %v1766 = vpow.pop %v1765
        %v1767 = vsel %vm801, %v1752, 0.0
        %1768 = vadd.xlane.f32.xlu0 %v1767
        %v1769 = vpop.xlane.xlu0 %1768
        %v1770 = vsel %vm801, %v1754, 0.0
        %1771 = vadd.xlane.f32.xlu0 %v1770
        %v1772 = vpop.xlane.xlu0 %1771
        %v1773 = vsel %vm801, %v1756, 0.0
        %1774 = vadd.xlane.f32.xlu0 %v1773
        %v1775 = vpop.xlane.xlu0 %1774
        %v1776 = vsel %vm801, %v1758, 0.0
        %1777 = vadd.xlane.f32.xlu0 %v1776
        %v1778 = vpop.xlane.xlu0 %1777
        %v1779 = vsel %vm801, %v1760, 0.0
        %1780 = vadd.xlane.f32.xlu0 %v1779
        %v1781 = vpop.xlane.xlu0 %1780
        %v1782 = vsel %vm801, %v1762, 0.0
        %1783 = vadd.xlane.f32.xlu0 %v1782
        %v1784 = vpop.xlane.xlu0 %1783
        %v1785 = vsel %vm801, %v1764, 0.0
        %1786 = vadd.xlane.f32.xlu0 %v1785
        %v1787 = vpop.xlane.xlu0 %1786
        %v1788 = vsel %vm801, %v1766, 0.0
        %1789 = vadd.xlane.f32.xlu0 %v1788
        %v1790 = vpop.xlane.xlu0 %1789
        %v1791 = vrcp.pop %v1769
        %v1792 = vrcp.pop %v1772
        %v1793 = vrcp.pop %v1775
        %v1794 = vrcp.pop %v1778
        %v1795 = vrcp.pop %v1781
        %v1796 = vrcp.pop %v1784
        %v1797 = vrcp.pop %v1787
        %v1798 = vrcp.pop %v1790
        %v1799 = vmul.f32 %v1752, %v1791
        %v1800 = vmul.f32 %v1754, %v1792
        %v1801 = vmul.f32 %v1756, %v1793
        %v1802 = vmul.f32 %v1758, %v1794
        %v1803 = vmul.f32 %v1760, %v1795
        %v1804 = vmul.f32 %v1762, %v1796
        %v1805 = vmul.f32 %v1764, %v1797
        %v1806 = vmul.f32 %v1766, %v1798
        %v1807 = vpack.c.bf16 %v1800, %v1799
        %v1808 = vpack.c.bf16 %v1802, %v1801
        %v1809 = vpack.c.bf16 %v1804, %v1803
        %v1810 = vpack.c.bf16 %v1806, %v1805
        %1811 = vrot.lane.b32.xlu0 %v1499, 64
        %v1812 = vpop.permute.xlu0 %1811
        %v1815 = vsel %vm801, %v1807, 0
        %1817 = vmatprep.subr.bf16.mxu0 0
        %1818 = vmatpush1.bf16.msra.mxu0 0
        %1819 = vmatprep.subr.bf16.mxu0 0
        %1820 = vmatpush1.bf16.msra.mxu0 0
        %1821 = vmatprep.subr.bf16.mxu0 0
        %1822 = vmatpush1.bf16.msra.mxu0 0
        %1823 = vmatprep.subr.bf16.mxu0 0
        %1824 = vmatpush1.bf16.msra.mxu0 0
        %1825 = vmatprep.subr.bf16.mxu0 0
        %1826 = vmatpush1.bf16.msra.mxu0 0
        %1827 = vmatprep.subr.bf16.mxu0 0
        %1828 = vmatpush1.bf16.msra.mxu0 0
        %1829 = vmatprep.subr.bf16.mxu0 0
        %1830 = vmatpush1.bf16.msra.mxu0 0
        %1831 = vmatprep.subr.bf16.mxu0 0
        %1832 = vmatpush1.bf16.msra.mxu0 %v1812
        %1833 = vmatprep.subr.bf16.mxu0 0
        %1834 = vmatpush2.bf16.msra.mxu0 0
        %1835 = vmatprep.subr.bf16.mxu0 0
        %1836 = vmatpush2.bf16.msra.mxu0 0
        %1837 = vmatprep.subr.bf16.mxu0 0
        %1838 = vmatpush2.bf16.msra.mxu0 0
        %1839 = vmatprep.subr.bf16.mxu0 0
        %1840 = vmatpush2.bf16.msra.mxu0 0
        %1841 = vmatprep.subr.bf16.mxu0 0
        %1842 = vmatpush2.bf16.msra.mxu0 0
        %1843 = vmatprep.subr.bf16.mxu0 0
        %1844 = vmatpush2.bf16.msra.mxu0 0
        %1845 = vmatprep.subr.bf16.mxu0 0
        %1846 = vmatpush2.bf16.msra.mxu0 0
        %1847 = vmatprep.subr.bf16.mxu0 0
        %1848 = vmatpush2.bf16.msra.mxu0 0
        %1849 = vmatprep.mubr.bf16.mxu0 0
        %1850 = vmatmul.mubr.bf16.gmra.mxu0 %v1815
        %v1851 = vpop.f32.mrf.mxu0
        %v1852 = vadd.f32 0.0, %v1851
        %v1853 = vpop.f32.mrf.mxu0
        %v1854 = vpop.f32.mrf.mxu0
        %v1855 = vadd.f32 0.0, %v1854
        %v1856 = vpop.f32.mrf.mxu0
        %1857 = vdwg.mxu0
        %1858 = vrot.lane.b32.xlu0 %v1500, 64
        %v1859 = vpop.permute.xlu0 %1858
        %v1862 = vsel %vm801, %v1808, 0
        %1864 = vmatprep.subr.bf16.mxu0 0
        %1865 = vmatpush1.bf16.msra.mxu0 0
        %1866 = vmatprep.subr.bf16.mxu0 0
        %1867 = vmatpush1.bf16.msra.mxu0 0
        %1868 = vmatprep.subr.bf16.mxu0 0
        %1869 = vmatpush1.bf16.msra.mxu0 0
        %1870 = vmatprep.subr.bf16.mxu0 0
        %1871 = vmatpush1.bf16.msra.mxu0 0
        %1872 = vmatprep.subr.bf16.mxu0 0
        %1873 = vmatpush1.bf16.msra.mxu0 0
        %1874 = vmatprep.subr.bf16.mxu0 0
        %1875 = vmatpush1.bf16.msra.mxu0 0
        %1876 = vmatprep.subr.bf16.mxu0 0
        %1877 = vmatpush1.bf16.msra.mxu0 0
        %1878 = vmatprep.subr.bf16.mxu0 0
        %1879 = vmatpush1.bf16.msra.mxu0 %v1859
        %1880 = vmatprep.subr.bf16.mxu0 0
        %1881 = vmatpush2.bf16.msra.mxu0 0
        %1882 = vmatprep.subr.bf16.mxu0 0
        %1883 = vmatpush2.bf16.msra.mxu0 0
        %1884 = vmatprep.subr.bf16.mxu0 0
        %1885 = vmatpush2.bf16.msra.mxu0 0
        %1886 = vmatprep.subr.bf16.mxu0 0
        %1887 = vmatpush2.bf16.msra.mxu0 0
        %1888 = vmatprep.subr.bf16.mxu0 0
        %1889 = vmatpush2.bf16.msra.mxu0 0
        %1890 = vmatprep.subr.bf16.mxu0 0
        %1891 = vmatpush2.bf16.msra.mxu0 0
        %1892 = vmatprep.subr.bf16.mxu0 0
        %1893 = vmatpush2.bf16.msra.mxu0 0
        %1894 = vmatprep.subr.bf16.mxu0 0
        %1895 = vmatpush2.bf16.msra.mxu0 0
        %1896 = vmatprep.mubr.bf16.mxu0 0
        %1897 = vmatmul.mubr.bf16.gmra.mxu0 %v1862
        %v1898 = vpop.f32.mrf.mxu0
        %v1899 = vadd.f32 0.0, %v1898
        %v1900 = vpop.f32.mrf.mxu0
        %v1901 = vpop.f32.mrf.mxu0
        %v1902 = vadd.f32 0.0, %v1901
        %v1903 = vpop.f32.mrf.mxu0
        %1904 = vdwg.mxu0
        %1905 = vrot.lane.b32.xlu0 %v1501, 64
        %v1906 = vpop.permute.xlu0 %1905
        %v1909 = vsel %vm801, %v1809, 0
        %1911 = vmatprep.subr.bf16.mxu0 0
        %1912 = vmatpush1.bf16.msra.mxu0 0
        %1913 = vmatprep.subr.bf16.mxu0 0
        %1914 = vmatpush1.bf16.msra.mxu0 0
        %1915 = vmatprep.subr.bf16.mxu0 0
        %1916 = vmatpush1.bf16.msra.mxu0 0
        %1917 = vmatprep.subr.bf16.mxu0 0
        %1918 = vmatpush1.bf16.msra.mxu0 0
        %1919 = vmatprep.subr.bf16.mxu0 0
        %1920 = vmatpush1.bf16.msra.mxu0 0
        %1921 = vmatprep.subr.bf16.mxu0 0
        %1922 = vmatpush1.bf16.msra.mxu0 0
        %1923 = vmatprep.subr.bf16.mxu0 0
        %1924 = vmatpush1.bf16.msra.mxu0 0
        %1925 = vmatprep.subr.bf16.mxu0 0
        %1926 = vmatpush1.bf16.msra.mxu0 %v1906
        %1927 = vmatprep.subr.bf16.mxu0 0
        %1928 = vmatpush2.bf16.msra.mxu0 0
        %1929 = vmatprep.subr.bf16.mxu0 0
        %1930 = vmatpush2.bf16.msra.mxu0 0
        %1931 = vmatprep.subr.bf16.mxu0 0
        %1932 = vmatpush2.bf16.msra.mxu0 0
        %1933 = vmatprep.subr.bf16.mxu0 0
        %1934 = vmatpush2.bf16.msra.mxu0 0
        %1935 = vmatprep.subr.bf16.mxu0 0
        %1936 = vmatpush2.bf16.msra.mxu0 0
        %1937 = vmatprep.subr.bf16.mxu0 0
        %1938 = vmatpush2.bf16.msra.mxu0 0
        %1939 = vmatprep.subr.bf16.mxu0 0
        %1940 = vmatpush2.bf16.msra.mxu0 0
        %1941 = vmatprep.subr.bf16.mxu0 0
        %1942 = vmatpush2.bf16.msra.mxu0 0
        %1943 = vmatprep.mubr.bf16.mxu0 0
        %1944 = vmatmul.mubr.bf16.gmra.mxu0 %v1909
        %v1945 = vpop.f32.mrf.mxu0
        %v1946 = vadd.f32 0.0, %v1945
        %v1947 = vpop.f32.mrf.mxu0
        %v1948 = vpop.f32.mrf.mxu0
        %v1949 = vadd.f32 0.0, %v1948
        %v1950 = vpop.f32.mrf.mxu0
        %1951 = vdwg.mxu0
        %1952 = vrot.lane.b32.xlu0 %v1502, 64
        %v1953 = vpop.permute.xlu0 %1952
        %v1956 = vsel %vm801, %v1810, 0
        %1958 = vmatprep.subr.bf16.mxu0 0
        %1959 = vmatpush1.bf16.msra.mxu0 0
        %1960 = vmatprep.subr.bf16.mxu0 0
        %1961 = vmatpush1.bf16.msra.mxu0 0
        %1962 = vmatprep.subr.bf16.mxu0 0
        %1963 = vmatpush1.bf16.msra.mxu0 0
        %1964 = vmatprep.subr.bf16.mxu0 0
        %1965 = vmatpush1.bf16.msra.mxu0 0
        %1966 = vmatprep.subr.bf16.mxu0 0
        %1967 = vmatpush1.bf16.msra.mxu0 0
        %1968 = vmatprep.subr.bf16.mxu0 0
        %1969 = vmatpush1.bf16.msra.mxu0 0
        %1970 = vmatprep.subr.bf16.mxu0 0
        %1971 = vmatpush1.bf16.msra.mxu0 0
        %1972 = vmatprep.subr.bf16.mxu0 0
        %1973 = vmatpush1.bf16.msra.mxu0 %v1953
        %1974 = vmatprep.subr.bf16.mxu0 0
        %1975 = vmatpush2.bf16.msra.mxu0 0
        %1976 = vmatprep.subr.bf16.mxu0 0
        %1977 = vmatpush2.bf16.msra.mxu0 0
        %1978 = vmatprep.subr.bf16.mxu0 0
        %1979 = vmatpush2.bf16.msra.mxu0 0
        %1980 = vmatprep.subr.bf16.mxu0 0
        %1981 = vmatpush2.bf16.msra.mxu0 0
        %1982 = vmatprep.subr.bf16.mxu0 0
        %1983 = vmatpush2.bf16.msra.mxu0 0
        %1984 = vmatprep.subr.bf16.mxu0 0
        %1985 = vmatpush2.bf16.msra.mxu0 0
        %1986 = vmatprep.subr.bf16.mxu0 0
        %1987 = vmatpush2.bf16.msra.mxu0 0
        %1988 = vmatprep.subr.bf16.mxu0 0
        %1989 = vmatpush2.bf16.msra.mxu0 0
        %1990 = vmatprep.mubr.bf16.mxu0 0
        %1991 = vmatmul.mubr.bf16.gmra.mxu0 %v1956
        %v1992 = vpop.f32.mrf.mxu0
        %v1993 = vadd.f32 0.0, %v1992
        %v1994 = vpop.f32.mrf.mxu0
        %v1995 = vpop.f32.mrf.mxu0
        %v1996 = vadd.f32 0.0, %v1995
        %v1997 = vpop.f32.mrf.mxu0
        %1998 = vdwg.mxu0
        %2001 = vrot.lane.b32.xlu0 %v1899, 8
        %v2002 = vpop.permute.xlu0 %2001
        %2003 = vrot.lane.b32.xlu0 %v1902, 8
        %v2004 = vpop.permute.xlu0 %2003
        %2009 = vrot.lane.b32.xlu0 %v1946, 16
        %v2010 = vpop.permute.xlu0 %2009
        %2011 = vrot.lane.b32.xlu0 %v1949, 16
        %v2012 = vpop.permute.xlu0 %2011
        %2017 = vrot.lane.b32.xlu0 %v1993, 24
        %v2018 = vpop.permute.xlu0 %2017
        %2019 = vrot.lane.b32.xlu0 %v1996, 24
        %v2020 = vpop.permute.xlu0 %2019
        %v2023 = vsel %vm581, %v1852, %v2002
        %v2024 = vsel %vm581, %v1855, %v2004
        %v2025 = vsel %vm801, %v2023, %v2010
        %v2026 = vsel %vm801, %v2024, %v2012
        %v2027 = vsel %vm1110, %v2025, %v2018
        %v2028 = vsel %vm1110, %v2026, %v2020
        %v2029 = vpack.c.bf16 %v2028, %v2027
        %v2030 = vlaneseq
        %v2031 = vshrl.u32 %v2030, 7
        %v2032 = vsub.s32 2, %v2031
        %v2033 = vrot.slane %v1417, %v2032
        %v2038 = vunpack.c.l.b16 %v1398
        %v2039 = vunpack.c.l.b16 %v1399
        %v2040 = vunpack.c.l.b16 %v1400
        %v2041 = vunpack.c.l.b16 %v1401
        %v2042 = vpack.c.b16 %v2039, %v2038
        %v2043 = vpack.c.b16 %v2041, %v2040
        %v2047 = vsel %vm427, %v2029, 0
        %2049 = vmatprep.subr.bf16.mxu0 0
        %2050 = vmatpush1.bf16.msra.mxu0 0
        %2051 = vmatprep.subr.bf16.mxu0 0
        %2052 = vmatpush1.bf16.msra.mxu0 0
        %2053 = vmatprep.subr.bf16.mxu0 0
        %2054 = vmatpush1.bf16.msra.mxu0 0
        %2055 = vmatprep.subr.bf16.mxu0 0
        %2056 = vmatpush1.bf16.msra.mxu0 0
        %2057 = vmatprep.subr.bf16.mxu0 0
        %2058 = vmatpush1.bf16.msra.mxu0 0
        %2059 = vmatprep.subr.bf16.mxu0 0
        %2060 = vmatpush1.bf16.msra.mxu0 0
        %2061 = vmatprep.subr.bf16.mxu0 0
        %2062 = vmatpush1.bf16.msra.mxu0 %v2043
        %2063 = vmatprep.subr.bf16.mxu0 0
        %2064 = vmatpush1.bf16.msra.mxu0 %v2042
        %2065 = vmatprep.subr.bf16.mxu0 0
        %2066 = vmatpush2.bf16.msra.mxu0 0
        %2067 = vmatprep.subr.bf16.mxu0 0
        %2068 = vmatpush2.bf16.msra.mxu0 0
        %2069 = vmatprep.subr.bf16.mxu0 0
        %2070 = vmatpush2.bf16.msra.mxu0 0
        %2071 = vmatprep.subr.bf16.mxu0 0
        %2072 = vmatpush2.bf16.msra.mxu0 0
        %2073 = vmatprep.subr.bf16.mxu0 0
        %2074 = vmatpush2.bf16.msra.mxu0 0
        %2075 = vmatprep.subr.bf16.mxu0 0
        %2076 = vmatpush2.bf16.msra.mxu0 0
        %2077 = vmatprep.subr.bf16.mxu0 0
        %2078 = vmatpush2.bf16.msra.mxu0 0
        %2079 = vmatprep.subr.bf16.mxu0 0
        %2080 = vmatpush2.bf16.msra.mxu0 0
        %2081 = vmatprep.mubr.bf16.mxu0 0
        %2082 = vmatmul.mubr.bf16.gmra.mxu0 %v2047
        %v2083 = vpop.f32.mrf.mxu0
        %v2084 = vadd.f32 %v2033, %v2083
        %v2085 = vpop.f32.mrf.mxu0
        %v2086 = vpop.f32.mrf.mxu0
        %v2087 = vadd.f32 %v2033, %v2086
        %v2088 = vpop.f32.mrf.mxu0
        %2089 = vdwg.mxu0
        %v2090 = vadd.f32 %v1390, %v2084
        %v2091 = vadd.f32 %v1391, %v2087
        %v2092 = vsel %vm427, %v2090, 0.0
        %2093 = vadd.xlane.f32.xlu0 %v2092
        %v2094 = vpop.xlane.xlu0 %2093
        %v2095 = vsel %vm427, %v2091, 0.0
        %2096 = vadd.xlane.f32.xlu0 %v2095
        %v2097 = vpop.xlane.xlu0 %2096
        %v2098 = vmul.f32 %v2094, %v1182
        %v2099 = vmul.f32 %v2097, %v1182
        %v2100 = vsub.f32 %v2090, %v2098
        %v2101 = vsub.f32 %v2091, %v2099
        %v2102 = vmul.f32 %v2100, %v2100
        %v2103 = vmul.f32 %v2101, %v2101
        %v2104 = vsel %vm427, %v2102, 0.0
        %2105 = vadd.xlane.f32.xlu0 %v2104
        %v2106 = vpop.xlane.xlu0 %2105
        %v2107 = vsel %vm427, %v2103, 0.0
        %2108 = vadd.xlane.f32.xlu0 %v2107
        %v2109 = vpop.xlane.xlu0 %2108
        %v2110 = vmul.f32 %v2106, %v1182
        %v2111 = vmul.f32 %v2109, %v1182
        %v2112 = vadd.f32 %v2110, 1e-05
        %v2113 = vadd.f32 %v2111, 1e-05
        %v2114 = vrsqrt.pop %v2112
        %v2115 = vrsqrt.pop %v2113
        %v2116 = vmul.f32 %v2100, %v2114
        %v2117 = vmul.f32 %v2101, %v2115
        %v2118 = vlaneseq
        %v2119 = vshrl.u32 %v2118, 7
        %v2120 = vsub.s32 4, %v2119
        %v2121 = vrot.slane %v1417, %v2120
        %v2122 = vmul.f32 %v2116, %v2121
        %v2123 = vmul.f32 %v2117, %v2121
        %v2124 = vlaneseq
        %v2125 = vshrl.u32 %v2124, 7
        %v2126 = vsub.s32 5, %v2125
        %v2127 = vrot.slane %v1417, %v2126
        %v2128 = vadd.f32 %v2122, %v2127
        %v2129 = vadd.f32 %v2123, %v2127
        %v2130 = vpack.c.bf16 %v2129, %v2128
        %v2131 = vlaneseq
        %v2132 = vshrl.u32 %v2131, 7
        %v2133 = vsub.s32 1, %v2132
        %v2134 = vrot.slane %v1417, %v2133
        %v2139 = vunpack.c.l.b16 %v1403
        %v2140 = vunpack.c.l.b16 %v1404
        %v2141 = vunpack.c.l.b16 %v1405
        %v2142 = vunpack.c.l.b16 %v1406
        %v2143 = vpack.c.b16 %v2140, %v2139
        %v2144 = vpack.c.b16 %v2142, %v2141
        %v2148 = vsel %vm427, %v2130, 0
        %2150 = vmatprep.subr.bf16.mxu0 0
        %2151 = vmatpush1.bf16.msra.mxu0 0
        %2152 = vmatprep.subr.bf16.mxu0 0
        %2153 = vmatpush1.bf16.msra.mxu0 0
        %2154 = vmatprep.subr.bf16.mxu0 0
        %2155 = vmatpush1.bf16.msra.mxu0 0
        %2156 = vmatprep.subr.bf16.mxu0 0
        %2157 = vmatpush1.bf16.msra.mxu0 0
        %2158 = vmatprep.subr.bf16.mxu0 0
        %2159 = vmatpush1.bf16.msra.mxu0 0
        %2160 = vmatprep.subr.bf16.mxu0 0
        %2161 = vmatpush1.bf16.msra.mxu0 0
        %2162 = vmatprep.subr.bf16.mxu0 0
        %2163 = vmatpush1.bf16.msra.mxu0 %v2144
        %2164 = vmatprep.subr.bf16.mxu0 0
        %2165 = vmatpush1.bf16.msra.mxu0 %v2143
        %2166 = vmatprep.subr.bf16.mxu0 0
        %2167 = vmatpush2.bf16.msra.mxu0 0
        %2168 = vmatprep.subr.bf16.mxu0 0
        %2169 = vmatpush2.bf16.msra.mxu0 0
        %2170 = vmatprep.subr.bf16.mxu0 0
        %2171 = vmatpush2.bf16.msra.mxu0 0
        %2172 = vmatprep.subr.bf16.mxu0 0
        %2173 = vmatpush2.bf16.msra.mxu0 0
        %2174 = vmatprep.subr.bf16.mxu0 0
        %2175 = vmatpush2.bf16.msra.mxu0 0
        %2176 = vmatprep.subr.bf16.mxu0 0
        %2177 = vmatpush2.bf16.msra.mxu0 0
        %2178 = vmatprep.subr.bf16.mxu0 0
        %2179 = vmatpush2.bf16.msra.mxu0 0
        %2180 = vmatprep.subr.bf16.mxu0 0
        %2181 = vmatpush2.bf16.msra.mxu0 0
        %2182 = vmatprep.mubr.bf16.mxu0 0
        %2183 = vmatmul.mubr.bf16.gmra.mxu0 %v2148
        %v2184 = vpop.f32.mrf.mxu0
        %v2185 = vadd.f32 %v2134, %v2184
        %v2186 = vpop.f32.mrf.mxu0
        %v2187 = vpop.f32.mrf.mxu0
        %v2188 = vadd.f32 %v2134, %v2187
        %v2189 = vpop.f32.mrf.mxu0
        %2190 = vdwg.mxu0
        %v2191 = vmax.f32 %v2185, 0.0
        %v2192 = vmax.f32 %v2188, 0.0
        %v2193 = vpack.c.bf16 %v2192, %v2191
        %v2194 = vlaneseq
        %v2195 = vshrl.u32 %v2194, 7
        %v2196 = vsub.s32 3, %v2195
        %v2197 = vrot.slane %v1417, %v2196
        %v2206 = vunpack.c.l.b16 %v1408
        %v2207 = vunpack.c.l.b16 %v1409
        %v2208 = vunpack.c.l.b16 %v1410
        %v2209 = vunpack.c.l.b16 %v1411
        %v2210 = vunpack.c.l.b16 %v1412
        %v2211 = vunpack.c.l.b16 %v1413
        %v2212 = vunpack.c.l.b16 %v1414
        %v2213 = vunpack.c.l.b16 %v1415
        %v2214 = vpack.c.b16 %v2207, %v2206
        %v2215 = vpack.c.b16 %v2209, %v2208
        %v2216 = vpack.c.b16 %v2211, %v2210
        %v2217 = vpack.c.b16 %v2213, %v2212
        %v2223 = vsel %vm1307, %v2193, 0
        %2225 = vmatprep.subr.bf16.mxu0 0
        %2226 = vmatpush1.bf16.msra.mxu0 0
        %2227 = vmatprep.subr.bf16.mxu0 0
        %2228 = vmatpush1.bf16.msra.mxu0 0
        %2229 = vmatprep.subr.bf16.mxu0 0
        %2230 = vmatpush1.bf16.msra.mxu0 0
        %2231 = vmatprep.subr.bf16.mxu0 0
        %2232 = vmatpush1.bf16.msra.mxu0 0
        %2233 = vmatprep.subr.bf16.mxu0 0
        %2234 = vmatpush1.bf16.msra.mxu0 %v2217
        %2235 = vmatprep.subr.bf16.mxu0 0
        %2236 = vmatpush1.bf16.msra.mxu0 %v2216
        %2237 = vmatprep.subr.bf16.mxu0 0
        %2238 = vmatpush1.bf16.msra.mxu0 %v2215
        %2239 = vmatprep.subr.bf16.mxu0 0
        %2240 = vmatpush1.bf16.msra.mxu0 %v2214
        %2241 = vmatprep.subr.bf16.mxu0 0
        %2242 = vmatpush2.bf16.msra.mxu0 0
        %2243 = vmatprep.subr.bf16.mxu0 0
        %2244 = vmatpush2.bf16.msra.mxu0 0
        %2245 = vmatprep.subr.bf16.mxu0 0
        %2246 = vmatpush2.bf16.msra.mxu0 0
        %2247 = vmatprep.subr.bf16.mxu0 0
        %2248 = vmatpush2.bf16.msra.mxu0 0
        %2249 = vmatprep.subr.bf16.mxu0 0
        %2250 = vmatpush2.bf16.msra.mxu0 0
        %2251 = vmatprep.subr.bf16.mxu0 0
        %2252 = vmatpush2.bf16.msra.mxu0 0
        %2253 = vmatprep.subr.bf16.mxu0 0
        %2254 = vmatpush2.bf16.msra.mxu0 0
        %2255 = vmatprep.subr.bf16.mxu0 0
        %2256 = vmatpush2.bf16.msra.mxu0 0
        %2257 = vmatprep.mubr.bf16.mxu0 0
        %2258 = vmatmul.mubr.bf16.gmra.mxu0 %v2223
        %v2259 = vpop.f32.mrf.mxu0
        %v2260 = vadd.f32 %v2197, %v2259
        %v2261 = vpop.f32.mrf.mxu0
        %v2262 = vpop.f32.mrf.mxu0
        %v2263 = vadd.f32 %v2197, %v2262
        %v2264 = vpop.f32.mrf.mxu0
        %2265 = vdwg.mxu0
        %v2266 = vadd.f32 %v2128, %v2260
        %v2267 = vadd.f32 %v2129, %v2263
        %v2268 = vsel %vm427, %v2266, 0.0
        %2269 = vadd.xlane.f32.xlu0 %v2268
        %v2270 = vpop.xlane.xlu0 %2269
        %v2271 = vsel %vm427, %v2267, 0.0
        %2272 = vadd.xlane.f32.xlu0 %v2271
        %v2273 = vpop.xlane.xlu0 %2272
        %v2274 = vmul.f32 %v2270, %v1182
        %v2275 = vmul.f32 %v2273, %v1182
        %v2276 = vsub.f32 %v2266, %v2274
        %v2277 = vsub.f32 %v2267, %v2275
        %v2278 = vmul.f32 %v2276, %v2276
        %v2279 = vmul.f32 %v2277, %v2277
        %v2280 = vsel %vm427, %v2278, 0.0
        %2281 = vadd.xlane.f32.xlu0 %v2280
        %v2282 = vpop.xlane.xlu0 %2281
        %v2283 = vsel %vm427, %v2279, 0.0
        %2284 = vadd.xlane.f32.xlu0 %v2283
        %v2285 = vpop.xlane.xlu0 %2284
        %v2286 = vmul.f32 %v2282, %v1182
        %v2287 = vmul.f32 %v2285, %v1182
        %v2288 = vadd.f32 %v2286, 1e-05
        %v2289 = vadd.f32 %v2287, 1e-05
        %v2290 = vrsqrt.pop %v2288
        %v2291 = vrsqrt.pop %v2289
        %v2292 = vmul.f32 %v2276, %v2290
        %v2293 = vmul.f32 %v2277, %v2291
        %v2294 = vlaneseq
        %v2295 = vshrl.u32 %v2294, 7
        %v2296 = vsub.s32 6, %v2295
        %v2297 = vrot.slane %v1417, %v2296
        %v2298 = vmul.f32 %v2292, %v2297
        %v2299 = vmul.f32 %v2293, %v2297
        %v2300 = vlaneseq
        %v2301 = vshrl.u32 %v2300, 7
        %v2302 = vsub.s32 7, %v2301
        %v2303 = vrot.slane %v1417, %v2302
        %v2304 = vadd.f32 %v2298, %v2303
        %v2305 = vadd.f32 %v2299, %v2303
        %2306 = vst.msk [vmem:[%s395] sm:$0xff] %vm427, %v2304
        %2307 = vst.msk [vmem:[%s395 + $0x8] sm:$0xff] %vm427, %v2305
        %s2308 = sand.u32 %s233, 1
        %s2309 = scalar_lea.sflag [#allocation4], %s2308
        %s2310 = sand.u32 %s233, 1
        %s2311 = smul.addr %s2310, 16
        %s2312 = scalar_lea.vmem [#allocation10], %s2311
        // Predicated region
        $region73: #{encoder_wrapper_forward.1} parent=55 // pred_check
          %p2313 = pneg %p243
        $region74: #{encoder_wrapper_forward.1} parent=55 // pred_check_branch
          %2315 = sbr.rel (%p2313) target = $region76
        $region75: #{encoder_wrapper_forward.1} parent=55 // pred_region
          %s2317 = ssub.s32 256, 256
          %2318 = vsyncadd %s2309, %s2317
          %s2319 = smul.addr %s26, 2
          %s2320 = smul.addr %s2319, 128
          %s2321 = scalar_lea.hbm %s9, %s2320
          %s2322 = sshll.u32 %s2312, 4
          %s2323 = int_to_ptr.vmem [resolvable:$true] %s2322
          %2328 = dma.vmem_to_hbm [thread:$0]  %s2323, 256, %s2321, %s2309, 128, 128, 8
        $region76: #{encoder_wrapper_forward.1} parent=55 // pred_fallthru
          _
      $region56: #{encoder_wrapper_forward.1} parent=5 // pred_fallthru
        _
      %p2329 = scmp.le.s32.totalorder 2, %s21
      // Predicated region
      $region77: #{encoder_wrapper_forward.1} parent=5 // pred_check
        %p2330 = pneg %p2329
      $region78: #{encoder_wrapper_forward.1} parent=5 // pred_check_branch
        %2332 = sbr.rel (%p2330) target = $region80
      $region79: #{encoder_wrapper_forward.1} parent=5 // pred_region
        %s2333 = ssub.s32 %s21, 2
        // Predicated region
        $region81: #{encoder_wrapper_forward.1} parent=79 // pred_check
          %p2334 = pneg %p249
        $region82: #{encoder_wrapper_forward.1} parent=79 // pred_check_branch
          %2336 = sbr.rel (%p2334) target = $region84
        $region83: #{encoder_wrapper_forward.1} parent=79 // pred_region
          %s2337 = sand.u32 %s234, 1
          %s2338 = scalar_lea.sflag [#allocation4], %s2337
          %s2339 = sand.u32 %s234, 1
          %s2340 = smul.addr %s2339, 16
          %s2341 = scalar_lea.vmem [#allocation10], %s2340
          %2342 = dma.done %s2338, 256
        $region84: #{encoder_wrapper_forward.1} parent=79 // pred_fallthru
          _
      $region80: #{encoder_wrapper_forward.1} parent=5 // pred_fallthru
        _
    $region6: #{encoder_wrapper_forward.1} parent=1 // loop_footer
      %s25 = sadd.s32 1, %s21
    $region7: #{encoder_wrapper_forward.1} parent=1 // loop_footer_branch
      %20 = sbr.rel target = $region3
    $region8: #{encoder_wrapper_forward.1} parent=1 // loop_exit
      _
    %2343 = vsyncpa [#allocation3], 1
    %s2344 = scalar_lea.sflag [#allocation3], 1
    %2345 = vsyncpa %s2344, 1
    %2346 = vsyncpa [#allocation6], 1
    %2347 = vsyncpa [#allocation9], 1
    %2348 = vsyncpa [#allocation4], 1
    %s2349 = scalar_lea.sflag [#allocation4], 1
    %2350 = vsyncpa %s2349, 1

</llo_original>
